<compile_context>
chip_gen: v6e
topology: v6e:2x2x1
jax: 0.10.0
libtpu: 0.0.40
codegen_flags: <defaults>
</compile_context>

<pallas_src>
import jax
import jax.numpy as jnp
from jax.experimental import pallas as pl
from jax.experimental.pallas import tpu as pltpu


def _lstm_fc_kernel(xp_ref, whh_ref, wfc_ref, bfc_ref, out_ref, h_scr, c_scr):
    """One invocation == one (batch-tile, time-chunk) grid cell.

    xp_ref:  [Tt, BT, 4H]  time-major x_t @ W_ih + (b_ih + b_hh)  (bf16 stream)
    whh_ref: [H, 4H]       fused recurrent weights, gate order (i, f, g, o)
    wfc_ref: [H, Cp]       final linear, lane-padded to a multiple of 128
    bfc_ref: [1, Cp]
    out_ref: [BT, Cp]      logits tile (written on the last time chunk only)
    h_scr:   [BT, H]  f32  hidden-state carry across time chunks
    c_scr:   [BT, 4H] f32  cell-state carry; the real cell state lives in lanes
                           [0, H), lanes [H, 4H) hold bounded don't-care data.
    """
    Tt = xp_ref.shape[0]
    BT = xp_ref.shape[1]
    H = whh_ref.shape[0]
    G = whh_ref.shape[1]                       # 4H

    t_chunk = pl.program_id(1)
    n_chunks = pl.num_programs(1)

    @pl.when(t_chunk == 0)
    def _init():
        h_scr[...] = jnp.zeros_like(h_scr)
        c_scr[...] = jnp.zeros_like(c_scr)

    # Recurrent weights resident in bf16 -> single MXU pass per step instead
    # of the multi-pass f32 emulation.  Gate math stays f32 on the VPU/EUP.
    whh_bf = whh_ref[...].astype(jnp.bfloat16)

    # Lane mask selecting the g-gate lane group [2H, 3H) (tanh); the other
    # three gate groups (i, f, o) use sigmoid.  Hoisted out of the serial loop.
    lane = jax.lax.broadcasted_iota(jnp.int32, (BT, G), 1)
    g_gate_lanes = (lane >= 2 * H) & (lane < 3 * H)

    def step(t, carry):
        h, c_full = carry
        # Serial critical path: one bf16 [BT,H]x[H,4H] MXU matmul + gate math.
        gates = xp_ref[t].astype(jnp.float32) + jnp.dot(
            h.astype(jnp.bfloat16), whh_bf, preferred_element_type=jnp.float32)
        # Packed activations: 2 full-lane EUP ops instead of 4 quarter-lane.
        sig = jax.nn.sigmoid(gates)
        tnh = jnp.tanh(gates)
        act = jnp.where(g_gate_lanes, tnh, sig)        # lanes: [i | f | g | o]
        # XLU lane rotations align f/g/o with the i-lane group [0, H).
        f_al = pltpu.roll(act, shift=3 * H, axis=1)    # lanes [0,H) hold f
        g_al = pltpu.roll(act, shift=2 * H, axis=1)    # lanes [0,H) hold g
        o_al = pltpu.roll(act, shift=1 * H, axis=1)    # lanes [0,H) hold o
        c_full = f_al * c_full + act * g_al            # lanes [0,H): new cell
        h_full = o_al * jnp.tanh(c_full)               # 3rd (last) EUP op
        return h_full[:, :H], c_full

    h0 = h_scr[...]
    c0 = c_scr[...]
    # Bounded unroll: keeps cross-step LLO scheduling without code bloat /
    # vreg live-range spills at realistic T.
    h_last, c_last = jax.lax.fori_loop(0, Tt, step, (h0, c0),
                                       unroll=min(8, Tt))
    h_scr[...] = h_last
    c_scr[...] = c_last

    @pl.when(t_chunk == n_chunks - 1)
    def _finalize():
        # fc on the last timestep's hidden state (== outputs[:, -1, :]),
        # lane-dense [BT, Cp] store.
        out_ref[...] = (jnp.dot(h_last, wfc_ref[...],
                                preferred_element_type=jnp.float32)
                        + bfc_ref[...]).astype(out_ref.dtype)


def _pick_time_chunk(T, bytes_per_step, budget_bytes):
    """Largest divisor of T whose double-buffered x_proj tile fits the budget."""
    best = 1
    for d in range(1, T + 1):
        if T % d == 0 and 2 * d * bytes_per_step <= budget_bytes:
            best = d
    return best


def comment_classifier_forward(X, params, *, batch_tile=32,
                               xproj_dtype=jnp.bfloat16):
    """X: [B, T] int32 token ids.  Returns logits [B, num_classes] (f32)."""
    emb_w = params["embedding"]          # [V, E], row 0 zeroed (padding_idx=0)
    w_ih = params["w_ih"]                # [E, 4H]  fused gates (i, f, g, o)
    w_hh = params["w_hh"]                # [H, 4H]
    b = params["b"]                      # [1, 4H]  b_ih + b_hh
    w_fc = params["w_fc"]                # [H, C]
    b_fc = params["b_fc"]                # [1, C]

    B, T = X.shape
    H, G = w_hh.shape                    # G == 4H (== 128 for H=32)
    C = w_fc.shape[1]

    LANES = 128
    BT = max(8, (batch_tile // 8) * 8)
    # v7x megacore: prefer >= 2 batch tiles whenever the batch allows it, so
    # the "parallel" axis can shard across both TensorCores.
    if pl.cdiv(B, BT) < 2 and B > 8:
        BT = max(8, pl.cdiv(B, 2 * 8) * 8)
    B_pad = pl.cdiv(B, BT) * BT
    C_pad = pl.cdiv(C, LANES) * LANES

    # Keep the double-buffered x_proj tile under ~24 MiB so the 32 MiB scoped
    # default (and v7x's 64 MiB physical VMEM) is never the limiter.
    itemsize = jnp.dtype(xproj_dtype).itemsize
    Tt = _pick_time_chunk(T, BT * G * itemsize, budget_bytes=24 * 2**20)

    # ---- glue in XLA ------------------------------------------------------
    # TODO(synk): embedding row-gather is data-dependent; left to XLA's
    # jnp.take (a scalar-prefetch Element-gather kernel is possible but not
    # worth it at these sizes).
    Xp = jnp.pad(X, ((0, B_pad - B), (0, 0)))         # padded rows use token 0
    embedded = jnp.take(emb_w, Xp, axis=0)            # [B_pad, T, E]
    # Time-invariant input projection hoisted off the serial path, emitted
    # directly time-major (no extra transpose pass) and streamed in bf16.
    x_proj = (jnp.einsum("bte,eg->tbg", embedded, w_ih,
                         precision=jax.lax.Precision.HIGHEST) + b
              ).astype(xproj_dtype)                   # [T, B_pad, 4H]

    # Lane-dense FC weights / output tile (sliced back to C afterwards).
    w_fc_p = jnp.pad(w_fc, ((0, 0), (0, C_pad - C)))
    b_fc_p = jnp.pad(b_fc, ((0, 0), (0, C_pad - C)))

    xp_tile = Tt * BT * G * itemsize                  # one x_proj buffer
    vmem_limit = int(min(100 * 2**20, max(32 * 2**20, 4 * xp_tile + 8 * 2**20)))

    out = pl.pallas_call(
        _lstm_fc_kernel,
        out_shape=jax.ShapeDtypeStruct((B_pad, C_pad), jnp.float32),
        grid=(B_pad // BT, T // Tt),
        in_specs=[
            pl.BlockSpec((Tt, BT, G), lambda b_, t_: (t_, b_, 0)),  # x_proj
            pl.BlockSpec((H, G), lambda b_, t_: (0, 0)),            # W_hh
            pl.BlockSpec((H, C_pad), lambda b_, t_: (0, 0)),        # W_fc
            pl.BlockSpec((1, C_pad), lambda b_, t_: (0, 0)),        # b_fc
        ],
        out_specs=pl.BlockSpec((BT, C_pad), lambda b_, t_: (b_, 0)),
        scratch_shapes=[
            pltpu.VMEM((BT, H), jnp.float32),   # h carry across time chunks
            pltpu.VMEM((BT, G), jnp.float32),   # c carry (packed-lane layout)
        ],
        compiler_params=pltpu.CompilerParams(
            # batch tiles independent -> megacore sharding on v7x; the time
            # chunk axis is the sequential recurrence.
            dimension_semantics=("parallel", "arbitrary"),
            vmem_limit_bytes=vmem_limit,
        ),
    )(x_proj, w_hh, w_fc_p, b_fc_p)

    return out[:B, :C]


def _reference_forward(X, params):
    """Pure-JAX f32 reference mirroring the PyTorch forward (for validation)."""
    emb = jnp.take(params["embedding"], X, axis=0)           # [B, T, E]
    w_ih, w_hh, b = params["w_ih"], params["w_hh"], params["b"]
    H = w_hh.shape[0]
    x_proj = jnp.einsum("bte,eg->btg", emb, w_ih,
                        precision=jax.lax.Precision.HIGHEST) + b

    def step(carry, xp_t):
        h, c = carry
        g = xp_t + jnp.dot(h, w_hh, precision=jax.lax.Precision.HIGHEST)
        i_g = jax.nn.sigmoid(g[:, 0 * H:1 * H])
        f_g = jax.nn.sigmoid(g[:, 1 * H:2 * H])
        g_g = jnp.tanh(g[:, 2 * H:3 * H])
        o_g = jax.nn.sigmoid(g[:, 3 * H:4 * H])
        c = f_g * c + i_g * g_g
        h = o_g * jnp.tanh(c)
        return (h, c), None

    B = X.shape[0]
    h0 = jnp.zeros((B, H), jnp.float32)
    c0 = jnp.zeros((B, H), jnp.float32)
    (h_last, _), _ = jax.lax.scan(step, (h0, c0),
                                  jnp.transpose(x_proj, (1, 0, 2)))
    return (jnp.dot(h_last, params["w_fc"],
                    precision=jax.lax.Precision.HIGHEST) + params["b_fc"])


def init_params(key, vocab_size, embedding_dim, hidden_size, num_classes):
    ks = jax.random.split(key, 7)
    scale = 0.1
    emb = scale * jax.random.normal(ks[0], (vocab_size, embedding_dim), jnp.float32)
    emb = emb.at[0].set(0.0)                       # padding_idx=0
    # PyTorch LSTM params weight_ih [4H, E] / weight_hh [4H, H] / biases [4H]
    # stored here pre-transposed and gate-fused: [in, 4H], gate order i,f,g,o.
    w_ih = scale * jax.random.normal(ks[1], (embedding_dim, 4 * hidden_size), jnp.float32)
    w_hh = scale * jax.random.normal(ks[2], (hidden_size, 4 * hidden_size), jnp.float32)
    b_ih = scale * jax.random.normal(ks[3], (1, 4 * hidden_size), jnp.float32)
    b_hh = scale * jax.random.normal(ks[4], (1, 4 * hidden_size), jnp.float32)
    w_fc = scale * jax.random.normal(ks[5], (hidden_size, num_classes), jnp.float32)
    b_fc = scale * jax.random.normal(ks[6], (1, num_classes), jnp.float32)
    return {
        "embedding": emb,
        "w_ih": w_ih,
        "w_hh": w_hh,
        "b": b_ih + b_hh,
        "w_fc": w_fc,
        "b_fc": b_fc,
    }


if __name__ == "__main__":
    # Small deterministic config: vocab=16, embed=32, hidden=32, classes=4
    B, T = 2, 8
    VOCAB, EMB, HID, CLS = 16, 32, 32, 4

    key = jax.random.PRNGKey(0)
    pkey, xkey = jax.random.split(key)
    params = init_params(pkey, VOCAB, EMB, HID, CLS)

    X = jax.random.randint(xkey, (B, T), minval=0, maxval=VOCAB, dtype=jnp.int32)

    logits = jax.jit(comment_classifier_forward)(X, params)
    jax.block_until_ready(logits)
    assert logits.shape == (B, CLS)

    ref = _reference_forward(X, params)
    # The kernel uses bf16 for the recurrent MXU matmul inputs and the x_proj
    # stream (per the perf review); compare against the f32 HIGHEST-precision
    # reference with a correspondingly loosened tolerance.
    max_err = float(jnp.max(jnp.abs(logits - ref)))
    assert max_err < 5e-2, f"mismatch vs reference, max abs err {max_err}"

    print("KERNEL_OK")
</pallas_src>

<mosaic_0001>
module attributes {stable_mosaic.version = 11 : i64} {
  func.func @_lstm_fc_kernel(%arg0: i32, %arg1: i32, %arg2: memref<8x32x128xbf16, #tpu.memory_space<vmem>>, %arg3: memref<32x128xf32, #tpu.memory_space<vmem>>, %arg4: memref<32x128xf32, #tpu.memory_space<vmem>>, %arg5: memref<1x128xf32, #tpu.memory_space<vmem>>, %arg6: memref<32x128xf32, #tpu.memory_space<vmem>>, %arg7: memref<32x32xf32, #tpu.memory_space<vmem>>, %arg8: memref<32x128xf32, #tpu.memory_space<vmem>>) attributes {dimension_semantics = [#tpu.dimension_semantics<parallel>, #tpu.dimension_semantics<arbitrary>], iteration_bounds = array<i64: 1, 1>, scalar_prefetch = 0 : i64, scratch_operands = 2 : i64, tpu.core_type = #tpu.core_type<tc>, window_params = [{transform_indices = @transform_0, window_bounds = array<i64: 8, 32, 128>}, {pipeline_mode = #tpu.pipeline_mode<synchronous>, transform_indices = @transform_1, window_bounds = array<i64: 32, 128>}, {pipeline_mode = #tpu.pipeline_mode<synchronous>, transform_indices = @transform_2, window_bounds = array<i64: 32, 128>}, {pipeline_mode = #tpu.pipeline_mode<synchronous>, transform_indices = @transform_3, window_bounds = array<i64: 1, 128>}, {transform_indices = @transform_4, window_bounds = array<i64: 32, 128>}]} {
    %c0_i32 = arith.constant 0 : i32
    %0 = arith.cmpi eq, %arg1, %c0_i32 : i32
    %1 = arith.extui %0 : i1 to i32
    %c0_i32_0 = arith.constant 0 : i32
    %2 = arith.cmpi ne, %1, %c0_i32_0 : i32
    scf.if %2 {
      %cst_67 = arith.constant 0.000000e+00 : f32
      %202 = vector.broadcast %cst_67 : f32 to vector<32x32xf32>
      %c0_68 = arith.constant 0 : index
      %c0_69 = arith.constant 0 : index
      %203 = vector.load %arg7[%c0_68, %c0_69] : memref<32x32xf32, #tpu.memory_space<vmem>>, vector<32x32xf32>
      tpu.vector_store %arg7[%c0_68, %c0_69], %202 {strides = array<i32>} : memref<32x32xf32, #tpu.memory_space<vmem>>, vector<32x32xf32>,
      %cst_70 = arith.constant 0.000000e+00 : f32
      %204 = vector.broadcast %cst_70 : f32 to vector<32x128xf32>
      %c0_71 = arith.constant 0 : index
      %c0_72 = arith.constant 0 : index
      %205 = vector.load %arg8[%c0_71, %c0_72] : memref<32x128xf32, #tpu.memory_space<vmem>>, vector<32x128xf32>
      tpu.vector_store %arg8[%c0_71, %c0_72], %204 {strides = array<i32>} : memref<32x128xf32, #tpu.memory_space<vmem>>, vector<32x128xf32>,
    } else {
    }
    %c0 = arith.constant 0 : index
    %c0_1 = arith.constant 0 : index
    %3 = vector.load %arg3[%c0, %c0_1] : memref<32x128xf32, #tpu.memory_space<vmem>>, vector<32x128xf32>
    %4 = arith.truncf %3 : vector<32x128xf32> to vector<32x128xbf16>
    %5 = tpu.iota {dimensions = array<i32: 1>} : vector<32x128xi32>
    %c64_i32 = arith.constant 64 : i32
    %6 = vector.broadcast %c64_i32 : i32 to vector<32x128xi32>
    %7 = arith.cmpi sge, %5, %6 : vector<32x128xi32>
    %c96_i32 = arith.constant 96 : i32
    %8 = vector.broadcast %c96_i32 : i32 to vector<32x128xi32>
    %9 = arith.cmpi slt, %5, %8 : vector<32x128xi32>
    %10 = arith.andi %7, %9 : vector<32x128xi1>
    %c0_2 = arith.constant 0 : index
    %c0_3 = arith.constant 0 : index
    %11 = vector.load %arg7[%c0_2, %c0_3] : memref<32x32xf32, #tpu.memory_space<vmem>>, vector<32x32xf32>
    %c0_4 = arith.constant 0 : index
    %c0_5 = arith.constant 0 : index
    %12 = vector.load %arg8[%c0_4, %c0_5] : memref<32x128xf32, #tpu.memory_space<vmem>>, vector<32x128xf32>
    %c0_i32_6 = arith.constant 0 : i32
    %13 = arith.index_cast %c0_i32_6 : i32 to index
    %c0_7 = arith.constant 0 : index
    %c0_8 = arith.constant 0 : index
    %14 = vector.load %arg2[%13, %c0_7, %c0_8] : memref<8x32x128xbf16, #tpu.memory_space<vmem>>, vector<1x32x128xbf16>
    %15 = vector.shape_cast %14 : vector<1x32x128xbf16> to vector<32x128xbf16>
    %16 = arith.extf %15 : vector<32x128xbf16> to vector<32x128xf32>
    %17 = arith.truncf %11 : vector<32x32xf32> to vector<32x32xbf16>
    %cst = arith.constant dense<0.000000e+00> : vector<32x128xf32>
    %18 = tpu.matmul %17, %4, %cst {dimension_numbers = #tpu.dot_dimension_numbers<[1], [0], [0], [1], [0, 0, 1, 1], [], []>} : vector<32x32xbf16>, vector<32x128xbf16>, vector<32x128xf32> -> vector<32x128xf32>
    %19 = arith.addf %16, %18 : vector<32x128xf32>
    %20 = arith.negf %19 : vector<32x128xf32>
    %21 = math.exp %20 : vector<32x128xf32>
    %cst_9 = arith.constant 1.000000e+00 : f32
    %22 = vector.broadcast %cst_9 : f32 to vector<32x128xf32>
    %23 = arith.addf %22, %21 : vector<32x128xf32>
    %24 = arith.divf %22, %23 : vector<32x128xf32>
    %25 = math.tanh %19 : vector<32x128xf32>
    %26 = arith.select %10, %25, %24 : vector<32x128xi1>, vector<32x128xf32>
    %c96_i32_10 = arith.constant 96 : i32
    %27 = tpu.dynamic_rotate %26 by %c96_i32_10 dim 1 : vector<32x128xf32>, i32 -> vector<32x128xf32>
    %c64_i32_11 = arith.constant 64 : i32
    %28 = tpu.dynamic_rotate %26 by %c64_i32_11 dim 1 : vector<32x128xf32>, i32 -> vector<32x128xf32>
    %c32_i32 = arith.constant 32 : i32
    %29 = tpu.dynamic_rotate %26 by %c32_i32 dim 1 : vector<32x128xf32>, i32 -> vector<32x128xf32>
    %30 = arith.mulf %27, %12 : vector<32x128xf32>
    %31 = arith.mulf %26, %28 : vector<32x128xf32>
    %32 = arith.addf %30, %31 : vector<32x128xf32>
    %33 = math.tanh %32 : vector<32x128xf32>
    %34 = arith.mulf %29, %33 : vector<32x128xf32>
    %35 = vector.extract_strided_slice %34 {offsets = [0, 0], sizes = [32, 32], strides = [1, 1]} : vector<32x128xf32> to vector<32x32xf32>
    %c1_i32 = arith.constant 1 : i32
    %36 = arith.index_cast %c1_i32 : i32 to index
    %c0_12 = arith.constant 0 : index
    %c0_13 = arith.constant 0 : index
    %37 = vector.load %arg2[%36, %c0_12, %c0_13] : memref<8x32x128xbf16, #tpu.memory_space<vmem>>, vector<1x32x128xbf16>
    %38 = vector.shape_cast %37 : vector<1x32x128xbf16> to vector<32x128xbf16>
    %39 = arith.extf %38 : vector<32x128xbf16> to vector<32x128xf32>
    %40 = arith.truncf %35 : vector<32x32xf32> to vector<32x32xbf16>
    %cst_14 = arith.constant dense<0.000000e+00> : vector<32x128xf32>
    %41 = tpu.matmul %40, %4, %cst_14 {dimension_numbers = #tpu.dot_dimension_numbers<[1], [0], [0], [1], [0, 0, 1, 1], [], []>} : vector<32x32xbf16>, vector<32x128xbf16>, vector<32x128xf32> -> vector<32x128xf32>
    %42 = arith.addf %39, %41 : vector<32x128xf32>
    %43 = arith.negf %42 : vector<32x128xf32>
    %44 = math.exp %43 : vector<32x128xf32>
    %cst_15 = arith.constant 1.000000e+00 : f32
    %45 = vector.broadcast %cst_15 : f32 to vector<32x128xf32>
    %46 = arith.addf %45, %44 : vector<32x128xf32>
    %47 = arith.divf %45, %46 : vector<32x128xf32>
    %48 = math.tanh %42 : vector<32x128xf32>
    %49 = arith.select %10, %48, %47 : vector<32x128xi1>, vector<32x128xf32>
    %c96_i32_16 = arith.constant 96 : i32
    %50 = tpu.dynamic_rotate %49 by %c96_i32_16 dim 1 : vector<32x128xf32>, i32 -> vector<32x128xf32>
    %c64_i32_17 = arith.constant 64 : i32
    %51 = tpu.dynamic_rotate %49 by %c64_i32_17 dim 1 : vector<32x128xf32>, i32 -> vector<32x128xf32>
    %c32_i32_18 = arith.constant 32 : i32
    %52 = tpu.dynamic_rotate %49 by %c32_i32_18 dim 1 : vector<32x128xf32>, i32 -> vector<32x128xf32>
    %53 = arith.mulf %50, %32 : vector<32x128xf32>
    %54 = arith.mulf %49, %51 : vector<32x128xf32>
    %55 = arith.addf %53, %54 : vector<32x128xf32>
    %56 = math.tanh %55 : vector<32x128xf32>
    %57 = arith.mulf %52, %56 : vector<32x128xf32>
    %58 = vector.extract_strided_slice %57 {offsets = [0, 0], sizes = [32, 32], strides = [1, 1]} : vector<32x128xf32> to vector<32x32xf32>
    %c2_i32 = arith.constant 2 : i32
    %59 = arith.index_cast %c2_i32 : i32 to index
    %c0_19 = arith.constant 0 : index
    %c0_20 = arith.constant 0 : index
    %60 = vector.load %arg2[%59, %c0_19, %c0_20] : memref<8x32x128xbf16, #tpu.memory_space<vmem>>, vector<1x32x128xbf16>
    %61 = vector.shape_cast %60 : vector<1x32x128xbf16> to vector<32x128xbf16>
    %62 = arith.extf %61 : vector<32x128xbf16> to vector<32x128xf32>
    %63 = arith.truncf %58 : vector<32x32xf32> to vector<32x32xbf16>
    %cst_21 = arith.constant dense<0.000000e+00> : vector<32x128xf32>
    %64 = tpu.matmul %63, %4, %cst_21 {dimension_numbers = #tpu.dot_dimension_numbers<[1], [0], [0], [1], [0, 0, 1, 1], [], []>} : vector<32x32xbf16>, vector<32x128xbf16>, vector<32x128xf32> -> vector<32x128xf32>
    %65 = arith.addf %62, %64 : vector<32x128xf32>
    %66 = arith.negf %65 : vector<32x128xf32>
    %67 = math.exp %66 : vector<32x128xf32>
    %cst_22 = arith.constant 1.000000e+00 : f32
    %68 = vector.broadcast %cst_22 : f32 to vector<32x128xf32>
    %69 = arith.addf %68, %67 : vector<32x128xf32>
    %70 = arith.divf %68, %69 : vector<32x128xf32>
    %71 = math.tanh %65 : vector<32x128xf32>
    %72 = arith.select %10, %71, %70 : vector<32x128xi1>, vector<32x128xf32>
    %c96_i32_23 = arith.constant 96 : i32
    %73 = tpu.dynamic_rotate %72 by %c96_i32_23 dim 1 : vector<32x128xf32>, i32 -> vector<32x128xf32>
    %c64_i32_24 = arith.constant 64 : i32
    %74 = tpu.dynamic_rotate %72 by %c64_i32_24 dim 1 : vector<32x128xf32>, i32 -> vector<32x128xf32>
    %c32_i32_25 = arith.constant 32 : i32
    %75 = tpu.dynamic_rotate %72 by %c32_i32_25 dim 1 : vector<32x128xf32>, i32 -> vector<32x128xf32>
    %76 = arith.mulf %73, %55 : vector<32x128xf32>
    %77 = arith.mulf %72, %74 : vector<32x128xf32>
    %78 = arith.addf %76, %77 : vector<32x128xf32>
    %79 = math.tanh %78 : vector<32x128xf32>
    %80 = arith.mulf %75, %79 : vector<32x128xf32>
    %81 = vector.extract_strided_slice %80 {offsets = [0, 0], sizes = [32, 32], strides = [1, 1]} : vector<32x128xf32> to vector<32x32xf32>
    %c3_i32 = arith.constant 3 : i32
    %82 = arith.index_cast %c3_i32 : i32 to index
    %c0_26 = arith.constant 0 : index
    %c0_27 = arith.constant 0 : index
    %83 = vector.load %arg2[%82, %c0_26, %c0_27] : memref<8x32x128xbf16, #tpu.memory_space<vmem>>, vector<1x32x128xbf16>
    %84 = vector.shape_cast %83 : vector<1x32x128xbf16> to vector<32x128xbf16>
    %85 = arith.extf %84 : vector<32x128xbf16> to vector<32x128xf32>
    %86 = arith.truncf %81 : vector<32x32xf32> to vector<32x32xbf16>
    %cst_28 = arith.constant dense<0.000000e+00> : vector<32x128xf32>
    %87 = tpu.matmul %86, %4, %cst_28 {dimension_numbers = #tpu.dot_dimension_numbers<[1], [0], [0], [1], [0, 0, 1, 1], [], []>} : vector<32x32xbf16>, vector<32x128xbf16>, vector<32x128xf32> -> vector<32x128xf32>
    %88 = arith.addf %85, %87 : vector<32x128xf32>
    %89 = arith.negf %88 : vector<32x128xf32>
    %90 = math.exp %89 : vector<32x128xf32>
    %cst_29 = arith.constant 1.000000e+00 : f32
    %91 = vector.broadcast %cst_29 : f32 to vector<32x128xf32>
    %92 = arith.addf %91, %90 : vector<32x128xf32>
    %93 = arith.divf %91, %92 : vector<32x128xf32>
    %94 = math.tanh %88 : vector<32x128xf32>
    %95 = arith.select %10, %94, %93 : vector<32x128xi1>, vector<32x128xf32>
    %c96_i32_30 = arith.constant 96 : i32
    %96 = tpu.dynamic_rotate %95 by %c96_i32_30 dim 1 : vector<32x128xf32>, i32 -> vector<32x128xf32>
    %c64_i32_31 = arith.constant 64 : i32
    %97 = tpu.dynamic_rotate %95 by %c64_i32_31 dim 1 : vector<32x128xf32>, i32 -> vector<32x128xf32>
    %c32_i32_32 = arith.constant 32 : i32
    %98 = tpu.dynamic_rotate %95 by %c32_i32_32 dim 1 : vector<32x128xf32>, i32 -> vector<32x128xf32>
    %99 = arith.mulf %96, %78 : vector<32x128xf32>
    %100 = arith.mulf %95, %97 : vector<32x128xf32>
    %101 = arith.addf %99, %100 : vector<32x128xf32>
    %102 = math.tanh %101 : vector<32x128xf32>
    %103 = arith.mulf %98, %102 : vector<32x128xf32>
    %104 = vector.extract_strided_slice %103 {offsets = [0, 0], sizes = [32, 32], strides = [1, 1]} : vector<32x128xf32> to vector<32x32xf32>
    %c4_i32 = arith.constant 4 : i32
    %105 = arith.index_cast %c4_i32 : i32 to index
    %c0_33 = arith.constant 0 : index
    %c0_34 = arith.constant 0 : index
    %106 = vector.load %arg2[%105, %c0_33, %c0_34] : memref<8x32x128xbf16, #tpu.memory_space<vmem>>, vector<1x32x128xbf16>
    %107 = vector.shape_cast %106 : vector<1x32x128xbf16> to vector<32x128xbf16>
    %108 = arith.extf %107 : vector<32x128xbf16> to vector<32x128xf32>
    %109 = arith.truncf %104 : vector<32x32xf32> to vector<32x32xbf16>
    %cst_35 = arith.constant dense<0.000000e+00> : vector<32x128xf32>
    %110 = tpu.matmul %109, %4, %cst_35 {dimension_numbers = #tpu.dot_dimension_numbers<[1], [0], [0], [1], [0, 0, 1, 1], [], []>} : vector<32x32xbf16>, vector<32x128xbf16>, vector<32x128xf32> -> vector<32x128xf32>
    %111 = arith.addf %108, %110 : vector<32x128xf32>
    %112 = arith.negf %111 : vector<32x128xf32>
    %113 = math.exp %112 : vector<32x128xf32>
    %cst_36 = arith.constant 1.000000e+00 : f32
    %114 = vector.broadcast %cst_36 : f32 to vector<32x128xf32>
    %115 = arith.addf %114, %113 : vector<32x128xf32>
    %116 = arith.divf %114, %115 : vector<32x128xf32>
    %117 = math.tanh %111 : vector<32x128xf32>
    %118 = arith.select %10, %117, %116 : vector<32x128xi1>, vector<32x128xf32>
    %c96_i32_37 = arith.constant 96 : i32
    %119 = tpu.dynamic_rotate %118 by %c96_i32_37 dim 1 : vector<32x128xf32>, i32 -> vector<32x128xf32>
    %c64_i32_38 = arith.constant 64 : i32
    %120 = tpu.dynamic_rotate %118 by %c64_i32_38 dim 1 : vector<32x128xf32>, i32 -> vector<32x128xf32>
    %c32_i32_39 = arith.constant 32 : i32
    %121 = tpu.dynamic_rotate %118 by %c32_i32_39 dim 1 : vector<32x128xf32>, i32 -> vector<32x128xf32>
    %122 = arith.mulf %119, %101 : vector<32x128xf32>
    %123 = arith.mulf %118, %120 : vector<32x128xf32>
    %124 = arith.addf %122, %123 : vector<32x128xf32>
    %125 = math.tanh %124 : vector<32x128xf32>
    %126 = arith.mulf %121, %125 : vector<32x128xf32>
    %127 = vector.extract_strided_slice %126 {offsets = [0, 0], sizes = [32, 32], strides = [1, 1]} : vector<32x128xf32> to vector<32x32xf32>
    %c5_i32 = arith.constant 5 : i32
    %128 = arith.index_cast %c5_i32 : i32 to index
    %c0_40 = arith.constant 0 : index
    %c0_41 = arith.constant 0 : index
    %129 = vector.load %arg2[%128, %c0_40, %c0_41] : memref<8x32x128xbf16, #tpu.memory_space<vmem>>, vector<1x32x128xbf16>
    %130 = vector.shape_cast %129 : vector<1x32x128xbf16> to vector<32x128xbf16>
    %131 = arith.extf %130 : vector<32x128xbf16> to vector<32x128xf32>
    %132 = arith.truncf %127 : vector<32x32xf32> to vector<32x32xbf16>
    %cst_42 = arith.constant dense<0.000000e+00> : vector<32x128xf32>
    %133 = tpu.matmul %132, %4, %cst_42 {dimension_numbers = #tpu.dot_dimension_numbers<[1], [0], [0], [1], [0, 0, 1, 1], [], []>} : vector<32x32xbf16>, vector<32x128xbf16>, vector<32x128xf32> -> vector<32x128xf32>
    %134 = arith.addf %131, %133 : vector<32x128xf32>
    %135 = arith.negf %134 : vector<32x128xf32>
    %136 = math.exp %135 : vector<32x128xf32>
    %cst_43 = arith.constant 1.000000e+00 : f32
    %137 = vector.broadcast %cst_43 : f32 to vector<32x128xf32>
    %138 = arith.addf %137, %136 : vector<32x128xf32>
    %139 = arith.divf %137, %138 : vector<32x128xf32>
    %140 = math.tanh %134 : vector<32x128xf32>
    %141 = arith.select %10, %140, %139 : vector<32x128xi1>, vector<32x128xf32>
    %c96_i32_44 = arith.constant 96 : i32
    %142 = tpu.dynamic_rotate %141 by %c96_i32_44 dim 1 : vector<32x128xf32>, i32 -> vector<32x128xf32>
    %c64_i32_45 = arith.constant 64 : i32
    %143 = tpu.dynamic_rotate %141 by %c64_i32_45 dim 1 : vector<32x128xf32>, i32 -> vector<32x128xf32>
    %c32_i32_46 = arith.constant 32 : i32
    %144 = tpu.dynamic_rotate %141 by %c32_i32_46 dim 1 : vector<32x128xf32>, i32 -> vector<32x128xf32>
    %145 = arith.mulf %142, %124 : vector<32x128xf32>
    %146 = arith.mulf %141, %143 : vector<32x128xf32>
    %147 = arith.addf %145, %146 : vector<32x128xf32>
    %148 = math.tanh %147 : vector<32x128xf32>
    %149 = arith.mulf %144, %148 : vector<32x128xf32>
    %150 = vector.extract_strided_slice %149 {offsets = [0, 0], sizes = [32, 32], strides = [1, 1]} : vector<32x128xf32> to vector<32x32xf32>
    %c6_i32 = arith.constant 6 : i32
    %151 = arith.index_cast %c6_i32 : i32 to index
    %c0_47 = arith.constant 0 : index
    %c0_48 = arith.constant 0 : index
    %152 = vector.load %arg2[%151, %c0_47, %c0_48] : memref<8x32x128xbf16, #tpu.memory_space<vmem>>, vector<1x32x128xbf16>
    %153 = vector.shape_cast %152 : vector<1x32x128xbf16> to vector<32x128xbf16>
    %154 = arith.extf %153 : vector<32x128xbf16> to vector<32x128xf32>
    %155 = arith.truncf %150 : vector<32x32xf32> to vector<32x32xbf16>
    %cst_49 = arith.constant dense<0.000000e+00> : vector<32x128xf32>
    %156 = tpu.matmul %155, %4, %cst_49 {dimension_numbers = #tpu.dot_dimension_numbers<[1], [0], [0], [1], [0, 0, 1, 1], [], []>} : vector<32x32xbf16>, vector<32x128xbf16>, vector<32x128xf32> -> vector<32x128xf32>
    %157 = arith.addf %154, %156 : vector<32x128xf32>
    %158 = arith.negf %157 : vector<32x128xf32>
    %159 = math.exp %158 : vector<32x128xf32>
    %cst_50 = arith.constant 1.000000e+00 : f32
    %160 = vector.broadcast %cst_50 : f32 to vector<32x128xf32>
    %161 = arith.addf %160, %159 : vector<32x128xf32>
    %162 = arith.divf %160, %161 : vector<32x128xf32>
    %163 = math.tanh %157 : vector<32x128xf32>
    %164 = arith.select %10, %163, %162 : vector<32x128xi1>, vector<32x128xf32>
    %c96_i32_51 = arith.constant 96 : i32
    %165 = tpu.dynamic_rotate %164 by %c96_i32_51 dim 1 : vector<32x128xf32>, i32 -> vector<32x128xf32>
    %c64_i32_52 = arith.constant 64 : i32
    %166 = tpu.dynamic_rotate %164 by %c64_i32_52 dim 1 : vector<32x128xf32>, i32 -> vector<32x128xf32>
    %c32_i32_53 = arith.constant 32 : i32
    %167 = tpu.dynamic_rotate %164 by %c32_i32_53 dim 1 : vector<32x128xf32>, i32 -> vector<32x128xf32>
    %168 = arith.mulf %165, %147 : vector<32x128xf32>
    %169 = arith.mulf %164, %166 : vector<32x128xf32>
    %170 = arith.addf %168, %169 : vector<32x128xf32>
    %171 = math.tanh %170 : vector<32x128xf32>
    %172 = arith.mulf %167, %171 : vector<32x128xf32>
    %173 = vector.extract_strided_slice %172 {offsets = [0, 0], sizes = [32, 32], strides = [1, 1]} : vector<32x128xf32> to vector<32x32xf32>
    %c7_i32 = arith.constant 7 : i32
    %174 = arith.index_cast %c7_i32 : i32 to index
    %c0_54 = arith.constant 0 : index
    %c0_55 = arith.constant 0 : index
    %175 = vector.load %arg2[%174, %c0_54, %c0_55] : memref<8x32x128xbf16, #tpu.memory_space<vmem>>, vector<1x32x128xbf16>
    %176 = vector.shape_cast %175 : vector<1x32x128xbf16> to vector<32x128xbf16>
    %177 = arith.extf %176 : vector<32x128xbf16> to vector<32x128xf32>
    %178 = arith.truncf %173 : vector<32x32xf32> to vector<32x32xbf16>
    %cst_56 = arith.constant dense<0.000000e+00> : vector<32x128xf32>
    %179 = tpu.matmul %178, %4, %cst_56 {dimension_numbers = #tpu.dot_dimension_numbers<[1], [0], [0], [1], [0, 0, 1, 1], [], []>} : vector<32x32xbf16>, vector<32x128xbf16>, vector<32x128xf32> -> vector<32x128xf32>
    %180 = arith.addf %177, %179 : vector<32x128xf32>
    %181 = arith.negf %180 : vector<32x128xf32>
    %182 = math.exp %181 : vector<32x128xf32>
    %cst_57 = arith.constant 1.000000e+00 : f32
    %183 = vector.broadcast %cst_57 : f32 to vector<32x128xf32>
    %184 = arith.addf %183, %182 : vector<32x128xf32>
    %185 = arith.divf %183, %184 : vector<32x128xf32>
    %186 = math.tanh %180 : vector<32x128xf32>
    %187 = arith.select %10, %186, %185 : vector<32x128xi1>, vector<32x128xf32>
    %c96_i32_58 = arith.constant 96 : i32
    %188 = tpu.dynamic_rotate %187 by %c96_i32_58 dim 1 : vector<32x128xf32>, i32 -> vector<32x128xf32>
    %c64_i32_59 = arith.constant 64 : i32
    %189 = tpu.dynamic_rotate %187 by %c64_i32_59 dim 1 : vector<32x128xf32>, i32 -> vector<32x128xf32>
    %c32_i32_60 = arith.constant 32 : i32
    %190 = tpu.dynamic_rotate %187 by %c32_i32_60 dim 1 : vector<32x128xf32>, i32 -> vector<32x128xf32>
    %191 = arith.mulf %188, %170 : vector<32x128xf32>
    %192 = arith.mulf %187, %189 : vector<32x128xf32>
    %193 = arith.addf %191, %192 : vector<32x128xf32>
    %194 = math.tanh %193 : vector<32x128xf32>
    %195 = arith.mulf %190, %194 : vector<32x128xf32>
    %196 = vector.extract_strided_slice %195 {offsets = [0, 0], sizes = [32, 32], strides = [1, 1]} : vector<32x128xf32> to vector<32x32xf32>
    %c8_i32 = arith.constant 8 : i32
    %c0_61 = arith.constant 0 : index
    %c0_62 = arith.constant 0 : index
    %197 = vector.load %arg7[%c0_61, %c0_62] : memref<32x32xf32, #tpu.memory_space<vmem>>, vector<32x32xf32>
    tpu.vector_store %arg7[%c0_61, %c0_62], %196 {strides = array<i32>} : memref<32x32xf32, #tpu.memory_space<vmem>>, vector<32x32xf32>,
    %c0_63 = arith.constant 0 : index
    %c0_64 = arith.constant 0 : index
    %198 = vector.load %arg8[%c0_63, %c0_64] : memref<32x128xf32, #tpu.memory_space<vmem>>, vector<32x128xf32>
    tpu.vector_store %arg8[%c0_63, %c0_64], %193 {strides = array<i32>} : memref<32x128xf32, #tpu.memory_space<vmem>>, vector<32x128xf32>,
    %c0_i32_65 = arith.constant 0 : i32
    %199 = arith.cmpi eq, %arg1, %c0_i32_65 : i32
    %200 = arith.extui %199 : i1 to i32
    %c0_i32_66 = arith.constant 0 : i32
    %201 = arith.cmpi ne, %200, %c0_i32_66 : i32
    scf.if %201 {
      %c0_67 = arith.constant 0 : index
      %c0_68 = arith.constant 0 : index
      %202 = vector.load %arg4[%c0_67, %c0_68] : memref<32x128xf32, #tpu.memory_space<vmem>>, vector<32x128xf32>
      %cst_69 = arith.constant dense<0.000000e+00> : vector<32x128xf32>
      %203 = tpu.matmul %196, %202, %cst_69 {dimension_numbers = #tpu.dot_dimension_numbers<[1], [0], [0], [1], [0, 0, 1, 1], [], []>} : vector<32x32xf32>, vector<32x128xf32>, vector<32x128xf32> -> vector<32x128xf32>
      %c0_70 = arith.constant 0 : index
      %c0_71 = arith.constant 0 : index
      %204 = vector.load %arg5[%c0_70, %c0_71] : memref<1x128xf32, #tpu.memory_space<vmem>>, vector<1x128xf32>
      %205 = vector.broadcast %204 : vector<1x128xf32> to vector<32x128xf32>
      %206 = arith.addf %203, %205 : vector<32x128xf32>
      %c0_72 = arith.constant 0 : index
      %c0_73 = arith.constant 0 : index
      %207 = vector.load %arg6[%c0_72, %c0_73] : memref<32x128xf32, #tpu.memory_space<vmem>>, vector<32x128xf32>
      tpu.vector_store %arg6[%c0_72, %c0_73], %206 {strides = array<i32>} : memref<32x128xf32, #tpu.memory_space<vmem>>, vector<32x128xf32>,
    } else {
    }
    return
  }
  func.func @transform_0(%arg0: i32, %arg1: i32) -> (i32, i32, i32) {
    %c0_i32 = arith.constant 0 : i32
    %c0_i32_0 = arith.constant 0 : i32
    return %arg1, %arg0, %c0_i32 : i32, i32, i32
  }
  func.func @transform_1(%arg0: i32, %arg1: i32) -> (i32, i32) {
    %c0_i32 = arith.constant 0 : i32
    %c0_i32_0 = arith.constant 0 : i32
    %c0_i32_1 = arith.constant 0 : i32
    return %c0_i32, %c0_i32_0 : i32, i32
  }
  func.func @transform_2(%arg0: i32, %arg1: i32) -> (i32, i32) {
    %c0_i32 = arith.constant 0 : i32
    %c0_i32_0 = arith.constant 0 : i32
    %c0_i32_1 = arith.constant 0 : i32
    return %c0_i32, %c0_i32_0 : i32, i32
  }
  func.func @transform_3(%arg0: i32, %arg1: i32) -> (i32, i32) {
    %c0_i32 = arith.constant 0 : i32
    %c0_i32_0 = arith.constant 0 : i32
    %c0_i32_1 = arith.constant 0 : i32
    return %c0_i32, %c0_i32_0 : i32, i32
  }
  func.func @transform_4(%arg0: i32, %arg1: i32) -> (i32, i32) {
    %c0_i32 = arith.constant 0 : i32
    %c0_i32_0 = arith.constant 0 : i32
    return %arg0, %c0_i32 : i32, i32
  }
}

</mosaic_0001>

<llo_original>
// kernel: comment_classifier_forward.1
$region0: #{comment_classifier_forward.1}
  #allocation0 [shape = 'u32[]', space=smem, size = 0x4, offset = 0x4, fixed_abs, tag = 'smem constant byte address 0x4 - core index']
  #allocation1 [shape = 'u32[144,128]{1,0:T(1,128)}', space=vmem, size = 0x12000, scoped, tag = 'internal scratch']
  #allocation2 [shape = 'f32[32,32]{1,0:T(8,128)}', space=vmem, size = 0x4000, scoped, tag = 'scratch operand']
  #allocation3 [shape = 'f32[32,128]{1,0:T(8,128)}', space=vmem, size = 0x4000, scoped, tag = 'scratch operand']
  %s0 = inlined_call_operand.vmem [shape: bf16[8,32,128], index: 0, kind: input, shape index: {}]
  %s1 = inlined_call_operand.vmem [shape: f32[32,128], index: 1, kind: input, shape index: {}]
  %s2 = inlined_call_operand.vmem [shape: f32[32,128], index: 2, kind: input, shape index: {}]
  %s3 = inlined_call_operand.vmem [shape: f32[1,128], index: 3, kind: input, shape index: {}]
  %s4 = inlined_call_operand.vmem [shape: f32[32,128], index: 4, kind: output, shape index: {}]
  %s5 = sld [smem:[#allocation0]]
  $region34: #{comment_classifier_forward.1} parent=0
    _
  %s7 = ssub.s32 1, %s5
  %s8 = scalar_select 0, %s7, %s5
  // Predicated region
  $region2: #{comment_classifier_forward.1} parent=0 // pred_check
    _
  $region3: #{comment_classifier_forward.1} parent=0 // pred_check_branch
    %10 = sbr.rel (0) target = $region5
  $region4: #{comment_classifier_forward.1} parent=0 // pred_region
    _
  $region5: #{comment_classifier_forward.1} parent=0 // pred_fallthru
    _
  // Predicated region
  $region6: #{comment_classifier_forward.1} parent=0 // pred_check
    _
  $region7: #{comment_classifier_forward.1} parent=0 // pred_check_branch
    %12 = sbr.rel (0) target = $region9
  $region8: #{comment_classifier_forward.1} parent=0 // pred_region
    _
  $region9: #{comment_classifier_forward.1} parent=0 // pred_fallthru
    _
  // Predicated region
  $region10: #{comment_classifier_forward.1} parent=0 // pred_check
    _
  $region11: #{comment_classifier_forward.1} parent=0 // pred_check_branch
    %14 = sbr.rel (0) target = $region13
  $region12: #{comment_classifier_forward.1} parent=0 // pred_region
    _
  $region13: #{comment_classifier_forward.1} parent=0 // pred_fallthru
    _
  // Predicated region
  $region14: #{comment_classifier_forward.1} parent=0 // pred_check
    _
  $region15: #{comment_classifier_forward.1} parent=0 // pred_check_branch
    %16 = sbr.rel (0) target = $region17
  $region16: #{comment_classifier_forward.1} parent=0 // pred_region
    _
  $region17: #{comment_classifier_forward.1} parent=0 // pred_fallthru
    _
  %p18 = scmp.eq.s32.totalorder 0, 0
  // Predicated region
  $region18: #{comment_classifier_forward.1} parent=0 // pred_check
    %p19 = pneg %p18
  $region19: #{comment_classifier_forward.1} parent=0 // pred_check_branch
    %21 = sbr.rel (%p19) target = $region21
  $region20: #{comment_classifier_forward.1} parent=0 // pred_region
    %vm22 = vcmask 261120
    %23 = vst.msk [vmem:[#allocation2] sm:$0xff] %vm22, 0.0
    %24 = vst.msk [vmem:[#allocation2 + $0x8] sm:$0xff] %vm22, 0.0
    %25 = vst.msk [vmem:[#allocation2 + $0x10] sm:$0xff] %vm22, 0.0
    %26 = vst.msk [vmem:[#allocation2 + $0x18] sm:$0xff] %vm22, 0.0
    %27 = vst [vmem:[#allocation3] sm:$0xff] 0.0
    %28 = vst [vmem:[#allocation3 + $0x8] sm:$0xff] 0.0
    %29 = vst [vmem:[#allocation3 + $0x10] sm:$0xff] 0.0
    %30 = vst [vmem:[#allocation3 + $0x18] sm:$0xff] 0.0
  $region21: #{comment_classifier_forward.1} parent=0 // pred_fallthru
    _
  %v31 = vld [vmem:[%s1] sm:$0xff]
  %v32 = vld [vmem:[%s1 + $0x8] sm:$0xff]
  %v33 = vld [vmem:[%s1 + $0x10] sm:$0xff]
  %v34 = vld [vmem:[%s1 + $0x18] sm:$0xff]
  %v35 = vpack.c.bf16 %v32, %v31
  %v36 = vpack.c.bf16 %v34, %v33
  %v37 = vlaneseq
  %v38 = vand.u32 %v37, 127
  %vm39 = vcmp.ge.s32.totalorder %v38, 64
  %vm40 = vcmp.lt.s32.totalorder %v38, 96
  %vm41 = vmand %vm39, %vm40
  %v42 = vld [vmem:[#allocation2] sm:$0xff]
  %v43 = vld [vmem:[#allocation2 + $0x8] sm:$0xff]
  %v44 = vld [vmem:[#allocation2 + $0x10] sm:$0xff]
  %v45 = vld [vmem:[#allocation2 + $0x18] sm:$0xff]
  %v46 = vld [vmem:[#allocation3] sm:$0xff]
  %v47 = vld [vmem:[#allocation3 + $0x8] sm:$0xff]
  %v48 = vld [vmem:[#allocation3 + $0x10] sm:$0xff]
  %v49 = vld [vmem:[#allocation3 + $0x18] sm:$0xff]
  %v50 = vld [vmem:[%s0] sm:$0xf]
  %v51 = vld [vmem:[%s0 + $0x4] sm:$0xf]
  %v52 = vld [vmem:[%s0 + $0x8] sm:$0xf]
  %v53 = vld [vmem:[%s0 + $0xc] sm:$0xf]
  %v54 = vunpack.c.l.bf16 %v50
  %v55 = vunpack.c.l.bf16 %v51
  %v56 = vunpack.c.l.bf16 %v52
  %v57 = vunpack.c.l.bf16 %v53
  %v58 = vpack.c.bf16 %v43, %v42
  %v59 = vpack.c.bf16 %v45, %v44
  %vm60 = vcmask 261120
  %v62 = vsel %vm60, %v58, 0
  %v65 = vsel %vm60, %v59, 0
  %67 = vmatprep.subr.bf16.mxu0 0
  %68 = vmatpush1.bf16.msra.mxu0 0
  %69 = vmatprep.subr.bf16.mxu0 0
  %70 = vmatpush1.bf16.msra.mxu0 0
  %71 = vmatprep.subr.bf16.mxu0 0
  %72 = vmatpush1.bf16.msra.mxu0 0
  %73 = vmatprep.subr.bf16.mxu0 0
  %74 = vmatpush1.bf16.msra.mxu0 0
  %75 = vmatprep.subr.bf16.mxu0 0
  %76 = vmatpush1.bf16.msra.mxu0 0
  %77 = vmatprep.subr.bf16.mxu0 0
  %78 = vmatpush1.bf16.msra.mxu0 0
  %79 = vmatprep.subr.bf16.mxu0 0
  %80 = vmatpush1.bf16.msra.mxu0 %v36
  %81 = vmatprep.subr.bf16.mxu0 0
  %82 = vmatpush1.bf16.msra.mxu0 %v35
  %83 = vmatprep.subr.bf16.mxu0 0
  %84 = vmatpush2.bf16.msra.mxu0 0
  %85 = vmatprep.subr.bf16.mxu0 0
  %86 = vmatpush2.bf16.msra.mxu0 0
  %87 = vmatprep.subr.bf16.mxu0 0
  %88 = vmatpush2.bf16.msra.mxu0 0
  %89 = vmatprep.subr.bf16.mxu0 0
  %90 = vmatpush2.bf16.msra.mxu0 0
  %91 = vmatprep.subr.bf16.mxu0 0
  %92 = vmatpush2.bf16.msra.mxu0 0
  %93 = vmatprep.subr.bf16.mxu0 0
  %94 = vmatpush2.bf16.msra.mxu0 0
  %95 = vmatprep.subr.bf16.mxu0 0
  %96 = vmatpush2.bf16.msra.mxu0 0
  %97 = vmatprep.subr.bf16.mxu0 0
  %98 = vmatpush2.bf16.msra.mxu0 0
  %99 = vmatprep.mubr.bf16.mxu0 0
  %100 = vmatmul.mubr.bf16.gmra.mxu0 %v62
  %v101 = vpop.f32.mrf.mxu0
  %v102 = vadd.f32 0.0, %v101
  %v103 = vpop.f32.mrf.mxu0
  %v104 = vpop.f32.mrf.mxu0
  %v105 = vadd.f32 0.0, %v104
  %v106 = vpop.f32.mrf.mxu0
  %107 = vmatprep.mubr.bf16.mxu0 0
  %108 = vmatmul.mubr.bf16.gmra.mxu0 %v65
  %v109 = vpop.f32.mrf.mxu0
  %v110 = vadd.f32 0.0, %v109
  %v111 = vpop.f32.mrf.mxu0
  %v112 = vpop.f32.mrf.mxu0
  %v113 = vadd.f32 0.0, %v112
  %v114 = vpop.f32.mrf.mxu0
  %115 = vdwg.mxu0
  %v116 = vadd.f32 %v54, %v102
  %v117 = vadd.f32 %v55, %v105
  %v118 = vadd.f32 %v56, %v110
  %v119 = vadd.f32 %v57, %v113
  %v120 = vxor.u32 %v116, 2147483648
  %v121 = vxor.u32 %v117, 2147483648
  %v122 = vxor.u32 %v118, 2147483648
  %v123 = vxor.u32 %v119, 2147483648
  %v124 = vmul.f32 %v120, 1.442695
  %v125 = vpow.pop %v124
  %v126 = vmul.f32 %v121, 1.442695
  %v127 = vpow.pop %v126
  %v128 = vmul.f32 %v122, 1.442695
  %v129 = vpow.pop %v128
  %v130 = vmul.f32 %v123, 1.442695
  %v131 = vpow.pop %v130
  %v132 = vadd.f32 %v125, 1.0
  %v133 = vadd.f32 %v127, 1.0
  %v134 = vadd.f32 %v129, 1.0
  %v135 = vadd.f32 %v131, 1.0
  %v136 = vrcp.pop %v132
  %v137 = vmul.f32 1.0, %v136
  %v138 = vrcp.pop %v133
  %v139 = vmul.f32 1.0, %v138
  %v140 = vrcp.pop %v134
  %v141 = vmul.f32 1.0, %v140
  %v142 = vrcp.pop %v135
  %v143 = vmul.f32 1.0, %v142
  %v144 = vtanh.pop %v116
  %v145 = vtanh.pop %v117
  %v146 = vtanh.pop %v118
  %v147 = vtanh.pop %v119
  %v148 = vsel %vm41, %v144, %v137
  %v149 = vsel %vm41, %v145, %v139
  %v150 = vsel %vm41, %v146, %v141
  %v151 = vsel %vm41, %v147, %v143
  %152 = vrot.lane.b32.xlu0 %v148, 96
  %v153 = vpop.permute.xlu0 %152
  %154 = vrot.lane.b32.xlu0 %v149, 96
  %v155 = vpop.permute.xlu0 %154
  %156 = vrot.lane.b32.xlu0 %v150, 96
  %v157 = vpop.permute.xlu0 %156
  %158 = vrot.lane.b32.xlu0 %v151, 96
  %v159 = vpop.permute.xlu0 %158
  %160 = vrot.lane.b32.xlu0 %v148, 64
  %v161 = vpop.permute.xlu0 %160
  %162 = vrot.lane.b32.xlu0 %v149, 64
  %v163 = vpop.permute.xlu0 %162
  %164 = vrot.lane.b32.xlu0 %v150, 64
  %v165 = vpop.permute.xlu0 %164
  %166 = vrot.lane.b32.xlu0 %v151, 64
  %v167 = vpop.permute.xlu0 %166
  %168 = vrot.lane.b32.xlu0 %v148, 32
  %v169 = vpop.permute.xlu0 %168
  %170 = vrot.lane.b32.xlu0 %v149, 32
  %v171 = vpop.permute.xlu0 %170
  %172 = vrot.lane.b32.xlu0 %v150, 32
  %v173 = vpop.permute.xlu0 %172
  %174 = vrot.lane.b32.xlu0 %v151, 32
  %v175 = vpop.permute.xlu0 %174
  %v176 = vmul.f32 %v153, %v46
  %v177 = vmul.f32 %v155, %v47
  %v178 = vmul.f32 %v157, %v48
  %v179 = vmul.f32 %v159, %v49
  %v180 = vmul.f32 %v148, %v161
  %v181 = vmul.f32 %v149, %v163
  %v182 = vmul.f32 %v150, %v165
  %v183 = vmul.f32 %v151, %v167
  %v184 = vadd.f32 %v176, %v180
  %v185 = vadd.f32 %v177, %v181
  %v186 = vadd.f32 %v178, %v182
  %v187 = vadd.f32 %v179, %v183
  %v188 = vtanh.pop %v184
  %v189 = vtanh.pop %v185
  %v190 = vtanh.pop %v186
  %v191 = vtanh.pop %v187
  %v192 = vmul.f32 %v169, %v188
  %v193 = vmul.f32 %v171, %v189
  %v194 = vmul.f32 %v173, %v190
  %v195 = vmul.f32 %v175, %v191
  %s196 = scalar_lea.vmem %s0, 16
  %v197 = vld [vmem:[%s196] sm:$0xf]
  %v198 = vld [vmem:[%s196 + $0x4] sm:$0xf]
  %v199 = vld [vmem:[%s196 + $0x8] sm:$0xf]
  %v200 = vld [vmem:[%s196 + $0xc] sm:$0xf]
  %v201 = vunpack.c.l.bf16 %v197
  %v202 = vunpack.c.l.bf16 %v198
  %v203 = vunpack.c.l.bf16 %v199
  %v204 = vunpack.c.l.bf16 %v200
  %v205 = vpack.c.bf16 %v193, %v192
  %v206 = vpack.c.bf16 %v195, %v194
  %v208 = vsel %vm60, %v205, 0
  %v211 = vsel %vm60, %v206, 0
  %213 = vmatprep.subr.bf16.mxu0 0
  %214 = vmatpush1.bf16.msra.mxu0 0
  %215 = vmatprep.subr.bf16.mxu0 0
  %216 = vmatpush1.bf16.msra.mxu0 0
  %217 = vmatprep.subr.bf16.mxu0 0
  %218 = vmatpush1.bf16.msra.mxu0 0
  %219 = vmatprep.subr.bf16.mxu0 0
  %220 = vmatpush1.bf16.msra.mxu0 0
  %221 = vmatprep.subr.bf16.mxu0 0
  %222 = vmatpush1.bf16.msra.mxu0 0
  %223 = vmatprep.subr.bf16.mxu0 0
  %224 = vmatpush1.bf16.msra.mxu0 0
  %225 = vmatprep.subr.bf16.mxu0 0
  %226 = vmatpush1.bf16.msra.mxu0 %v36
  %227 = vmatprep.subr.bf16.mxu0 0
  %228 = vmatpush1.bf16.msra.mxu0 %v35
  %229 = vmatprep.subr.bf16.mxu0 0
  %230 = vmatpush2.bf16.msra.mxu0 0
  %231 = vmatprep.subr.bf16.mxu0 0
  %232 = vmatpush2.bf16.msra.mxu0 0
  %233 = vmatprep.subr.bf16.mxu0 0
  %234 = vmatpush2.bf16.msra.mxu0 0
  %235 = vmatprep.subr.bf16.mxu0 0
  %236 = vmatpush2.bf16.msra.mxu0 0
  %237 = vmatprep.subr.bf16.mxu0 0
  %238 = vmatpush2.bf16.msra.mxu0 0
  %239 = vmatprep.subr.bf16.mxu0 0
  %240 = vmatpush2.bf16.msra.mxu0 0
  %241 = vmatprep.subr.bf16.mxu0 0
  %242 = vmatpush2.bf16.msra.mxu0 0
  %243 = vmatprep.subr.bf16.mxu0 0
  %244 = vmatpush2.bf16.msra.mxu0 0
  %245 = vmatprep.mubr.bf16.mxu0 0
  %246 = vmatmul.mubr.bf16.gmra.mxu0 %v208
  %v247 = vpop.f32.mrf.mxu0
  %v248 = vadd.f32 0.0, %v247
  %v249 = vpop.f32.mrf.mxu0
  %v250 = vpop.f32.mrf.mxu0
  %v251 = vadd.f32 0.0, %v250
  %v252 = vpop.f32.mrf.mxu0
  %253 = vmatprep.mubr.bf16.mxu0 0
  %254 = vmatmul.mubr.bf16.gmra.mxu0 %v211
  %v255 = vpop.f32.mrf.mxu0
  %v256 = vadd.f32 0.0, %v255
  %v257 = vpop.f32.mrf.mxu0
  %v258 = vpop.f32.mrf.mxu0
  %v259 = vadd.f32 0.0, %v258
  %v260 = vpop.f32.mrf.mxu0
  %261 = vdwg.mxu0
  %v262 = vadd.f32 %v201, %v248
  %v263 = vadd.f32 %v202, %v251
  %v264 = vadd.f32 %v203, %v256
  %v265 = vadd.f32 %v204, %v259
  %v266 = vxor.u32 %v262, 2147483648
  %v267 = vxor.u32 %v263, 2147483648
  %v268 = vxor.u32 %v264, 2147483648
  %v269 = vxor.u32 %v265, 2147483648
  %v270 = vmul.f32 %v266, 1.442695
  %v271 = vpow.pop %v270
  %v272 = vmul.f32 %v267, 1.442695
  %v273 = vpow.pop %v272
  %v274 = vmul.f32 %v268, 1.442695
  %v275 = vpow.pop %v274
  %v276 = vmul.f32 %v269, 1.442695
  %v277 = vpow.pop %v276
  %v278 = vadd.f32 %v271, 1.0
  %v279 = vadd.f32 %v273, 1.0
  %v280 = vadd.f32 %v275, 1.0
  %v281 = vadd.f32 %v277, 1.0
  %v282 = vrcp.pop %v278
  %v283 = vmul.f32 1.0, %v282
  %v284 = vrcp.pop %v279
  %v285 = vmul.f32 1.0, %v284
  %v286 = vrcp.pop %v280
  %v287 = vmul.f32 1.0, %v286
  %v288 = vrcp.pop %v281
  %v289 = vmul.f32 1.0, %v288
  %v290 = vtanh.pop %v262
  %v291 = vtanh.pop %v263
  %v292 = vtanh.pop %v264
  %v293 = vtanh.pop %v265
  %v294 = vsel %vm41, %v290, %v283
  %v295 = vsel %vm41, %v291, %v285
  %v296 = vsel %vm41, %v292, %v287
  %v297 = vsel %vm41, %v293, %v289
  %298 = vrot.lane.b32.xlu0 %v294, 96
  %v299 = vpop.permute.xlu0 %298
  %300 = vrot.lane.b32.xlu0 %v295, 96
  %v301 = vpop.permute.xlu0 %300
  %302 = vrot.lane.b32.xlu0 %v296, 96
  %v303 = vpop.permute.xlu0 %302
  %304 = vrot.lane.b32.xlu0 %v297, 96
  %v305 = vpop.permute.xlu0 %304
  %306 = vrot.lane.b32.xlu0 %v294, 64
  %v307 = vpop.permute.xlu0 %306
  %308 = vrot.lane.b32.xlu0 %v295, 64
  %v309 = vpop.permute.xlu0 %308
  %310 = vrot.lane.b32.xlu0 %v296, 64
  %v311 = vpop.permute.xlu0 %310
  %312 = vrot.lane.b32.xlu0 %v297, 64
  %v313 = vpop.permute.xlu0 %312
  %314 = vrot.lane.b32.xlu0 %v294, 32
  %v315 = vpop.permute.xlu0 %314
  %316 = vrot.lane.b32.xlu0 %v295, 32
  %v317 = vpop.permute.xlu0 %316
  %318 = vrot.lane.b32.xlu0 %v296, 32
  %v319 = vpop.permute.xlu0 %318
  %320 = vrot.lane.b32.xlu0 %v297, 32
  %v321 = vpop.permute.xlu0 %320
  %v322 = vmul.f32 %v299, %v184
  %v323 = vmul.f32 %v301, %v185
  %v324 = vmul.f32 %v303, %v186
  %v325 = vmul.f32 %v305, %v187
  %v326 = vmul.f32 %v294, %v307
  %v327 = vmul.f32 %v295, %v309
  %v328 = vmul.f32 %v296, %v311
  %v329 = vmul.f32 %v297, %v313
  %v330 = vadd.f32 %v322, %v326
  %v331 = vadd.f32 %v323, %v327
  %v332 = vadd.f32 %v324, %v328
  %v333 = vadd.f32 %v325, %v329
  %v334 = vtanh.pop %v330
  %v335 = vtanh.pop %v331
  %v336 = vtanh.pop %v332
  %v337 = vtanh.pop %v333
  %v338 = vmul.f32 %v315, %v334
  %v339 = vmul.f32 %v317, %v335
  %v340 = vmul.f32 %v319, %v336
  %v341 = vmul.f32 %v321, %v337
  %s342 = scalar_lea.vmem %s0, 32
  %v343 = vld [vmem:[%s342] sm:$0xf]
  %v344 = vld [vmem:[%s342 + $0x4] sm:$0xf]
  %v345 = vld [vmem:[%s342 + $0x8] sm:$0xf]
  %v346 = vld [vmem:[%s342 + $0xc] sm:$0xf]
  %v347 = vunpack.c.l.bf16 %v343
  %v348 = vunpack.c.l.bf16 %v344
  %v349 = vunpack.c.l.bf16 %v345
  %v350 = vunpack.c.l.bf16 %v346
  %v351 = vpack.c.bf16 %v339, %v338
  %v352 = vpack.c.bf16 %v341, %v340
  %v354 = vsel %vm60, %v351, 0
  %v357 = vsel %vm60, %v352, 0
  %359 = vmatprep.subr.bf16.mxu0 0
  %360 = vmatpush1.bf16.msra.mxu0 0
  %361 = vmatprep.subr.bf16.mxu0 0
  %362 = vmatpush1.bf16.msra.mxu0 0
  %363 = vmatprep.subr.bf16.mxu0 0
  %364 = vmatpush1.bf16.msra.mxu0 0
  %365 = vmatprep.subr.bf16.mxu0 0
  %366 = vmatpush1.bf16.msra.mxu0 0
  %367 = vmatprep.subr.bf16.mxu0 0
  %368 = vmatpush1.bf16.msra.mxu0 0
  %369 = vmatprep.subr.bf16.mxu0 0
  %370 = vmatpush1.bf16.msra.mxu0 0
  %371 = vmatprep.subr.bf16.mxu0 0
  %372 = vmatpush1.bf16.msra.mxu0 %v36
  %373 = vmatprep.subr.bf16.mxu0 0
  %374 = vmatpush1.bf16.msra.mxu0 %v35
  %375 = vmatprep.subr.bf16.mxu0 0
  %376 = vmatpush2.bf16.msra.mxu0 0
  %377 = vmatprep.subr.bf16.mxu0 0
  %378 = vmatpush2.bf16.msra.mxu0 0
  %379 = vmatprep.subr.bf16.mxu0 0
  %380 = vmatpush2.bf16.msra.mxu0 0
  %381 = vmatprep.subr.bf16.mxu0 0
  %382 = vmatpush2.bf16.msra.mxu0 0
  %383 = vmatprep.subr.bf16.mxu0 0
  %384 = vmatpush2.bf16.msra.mxu0 0
  %385 = vmatprep.subr.bf16.mxu0 0
  %386 = vmatpush2.bf16.msra.mxu0 0
  %387 = vmatprep.subr.bf16.mxu0 0
  %388 = vmatpush2.bf16.msra.mxu0 0
  %389 = vmatprep.subr.bf16.mxu0 0
  %390 = vmatpush2.bf16.msra.mxu0 0
  %391 = vmatprep.mubr.bf16.mxu0 0
  %392 = vmatmul.mubr.bf16.gmra.mxu0 %v354
  %v393 = vpop.f32.mrf.mxu0
  %v394 = vadd.f32 0.0, %v393
  %v395 = vpop.f32.mrf.mxu0
  %v396 = vpop.f32.mrf.mxu0
  %v397 = vadd.f32 0.0, %v396
  %v398 = vpop.f32.mrf.mxu0
  %399 = vmatprep.mubr.bf16.mxu0 0
  %400 = vmatmul.mubr.bf16.gmra.mxu0 %v357
  %v401 = vpop.f32.mrf.mxu0
  %v402 = vadd.f32 0.0, %v401
  %v403 = vpop.f32.mrf.mxu0
  %v404 = vpop.f32.mrf.mxu0
  %v405 = vadd.f32 0.0, %v404
  %v406 = vpop.f32.mrf.mxu0
  %407 = vdwg.mxu0
  %v408 = vadd.f32 %v347, %v394
  %v409 = vadd.f32 %v348, %v397
  %v410 = vadd.f32 %v349, %v402
  %v411 = vadd.f32 %v350, %v405
  %v412 = vxor.u32 %v408, 2147483648
  %v413 = vxor.u32 %v409, 2147483648
  %v414 = vxor.u32 %v410, 2147483648
  %v415 = vxor.u32 %v411, 2147483648
  %v416 = vmul.f32 %v412, 1.442695
  %v417 = vpow.pop %v416
  %v418 = vmul.f32 %v413, 1.442695
  %v419 = vpow.pop %v418
  %v420 = vmul.f32 %v414, 1.442695
  %v421 = vpow.pop %v420
  %v422 = vmul.f32 %v415, 1.442695
  %v423 = vpow.pop %v422
  %v424 = vadd.f32 %v417, 1.0
  %v425 = vadd.f32 %v419, 1.0
  %v426 = vadd.f32 %v421, 1.0
  %v427 = vadd.f32 %v423, 1.0
  %v428 = vrcp.pop %v424
  %v429 = vmul.f32 1.0, %v428
  %v430 = vrcp.pop %v425
  %v431 = vmul.f32 1.0, %v430
  %v432 = vrcp.pop %v426
  %v433 = vmul.f32 1.0, %v432
  %v434 = vrcp.pop %v427
  %v435 = vmul.f32 1.0, %v434
  %v436 = vtanh.pop %v408
  %v437 = vtanh.pop %v409
  %v438 = vtanh.pop %v410
  %v439 = vtanh.pop %v411
  %v440 = vsel %vm41, %v436, %v429
  %v441 = vsel %vm41, %v437, %v431
  %v442 = vsel %vm41, %v438, %v433
  %v443 = vsel %vm41, %v439, %v435
  %444 = vrot.lane.b32.xlu0 %v440, 96
  %v445 = vpop.permute.xlu0 %444
  %446 = vrot.lane.b32.xlu0 %v441, 96
  %v447 = vpop.permute.xlu0 %446
  %448 = vrot.lane.b32.xlu0 %v442, 96
  %v449 = vpop.permute.xlu0 %448
  %450 = vrot.lane.b32.xlu0 %v443, 96
  %v451 = vpop.permute.xlu0 %450
  %452 = vrot.lane.b32.xlu0 %v440, 64
  %v453 = vpop.permute.xlu0 %452
  %454 = vrot.lane.b32.xlu0 %v441, 64
  %v455 = vpop.permute.xlu0 %454
  %456 = vrot.lane.b32.xlu0 %v442, 64
  %v457 = vpop.permute.xlu0 %456
  %458 = vrot.lane.b32.xlu0 %v443, 64
  %v459 = vpop.permute.xlu0 %458
  %460 = vrot.lane.b32.xlu0 %v440, 32
  %v461 = vpop.permute.xlu0 %460
  %462 = vrot.lane.b32.xlu0 %v441, 32
  %v463 = vpop.permute.xlu0 %462
  %464 = vrot.lane.b32.xlu0 %v442, 32
  %v465 = vpop.permute.xlu0 %464
  %466 = vrot.lane.b32.xlu0 %v443, 32
  %v467 = vpop.permute.xlu0 %466
  %v468 = vmul.f32 %v445, %v330
  %v469 = vmul.f32 %v447, %v331
  %v470 = vmul.f32 %v449, %v332
  %v471 = vmul.f32 %v451, %v333
  %v472 = vmul.f32 %v440, %v453
  %v473 = vmul.f32 %v441, %v455
  %v474 = vmul.f32 %v442, %v457
  %v475 = vmul.f32 %v443, %v459
  %v476 = vadd.f32 %v468, %v472
  %v477 = vadd.f32 %v469, %v473
  %v478 = vadd.f32 %v470, %v474
  %v479 = vadd.f32 %v471, %v475
  %v480 = vtanh.pop %v476
  %v481 = vtanh.pop %v477
  %v482 = vtanh.pop %v478
  %v483 = vtanh.pop %v479
  %v484 = vmul.f32 %v461, %v480
  %v485 = vmul.f32 %v463, %v481
  %v486 = vmul.f32 %v465, %v482
  %v487 = vmul.f32 %v467, %v483
  %s488 = scalar_lea.vmem %s0, 48
  %v489 = vld [vmem:[%s488] sm:$0xf]
  %v490 = vld [vmem:[%s488 + $0x4] sm:$0xf]
  %v491 = vld [vmem:[%s488 + $0x8] sm:$0xf]
  %v492 = vld [vmem:[%s488 + $0xc] sm:$0xf]
  %v493 = vunpack.c.l.bf16 %v489
  %v494 = vunpack.c.l.bf16 %v490
  %v495 = vunpack.c.l.bf16 %v491
  %v496 = vunpack.c.l.bf16 %v492
  %v497 = vpack.c.bf16 %v485, %v484
  %v498 = vpack.c.bf16 %v487, %v486
  %v500 = vsel %vm60, %v497, 0
  %v503 = vsel %vm60, %v498, 0
  %505 = vmatprep.subr.bf16.mxu0 0
  %506 = vmatpush1.bf16.msra.mxu0 0
  %507 = vmatprep.subr.bf16.mxu0 0
  %508 = vmatpush1.bf16.msra.mxu0 0
  %509 = vmatprep.subr.bf16.mxu0 0
  %510 = vmatpush1.bf16.msra.mxu0 0
  %511 = vmatprep.subr.bf16.mxu0 0
  %512 = vmatpush1.bf16.msra.mxu0 0
  %513 = vmatprep.subr.bf16.mxu0 0
  %514 = vmatpush1.bf16.msra.mxu0 0
  %515 = vmatprep.subr.bf16.mxu0 0
  %516 = vmatpush1.bf16.msra.mxu0 0
  %517 = vmatprep.subr.bf16.mxu0 0
  %518 = vmatpush1.bf16.msra.mxu0 %v36
  %519 = vmatprep.subr.bf16.mxu0 0
  %520 = vmatpush1.bf16.msra.mxu0 %v35
  %521 = vmatprep.subr.bf16.mxu0 0
  %522 = vmatpush2.bf16.msra.mxu0 0
  %523 = vmatprep.subr.bf16.mxu0 0
  %524 = vmatpush2.bf16.msra.mxu0 0
  %525 = vmatprep.subr.bf16.mxu0 0
  %526 = vmatpush2.bf16.msra.mxu0 0
  %527 = vmatprep.subr.bf16.mxu0 0
  %528 = vmatpush2.bf16.msra.mxu0 0
  %529 = vmatprep.subr.bf16.mxu0 0
  %530 = vmatpush2.bf16.msra.mxu0 0
  %531 = vmatprep.subr.bf16.mxu0 0
  %532 = vmatpush2.bf16.msra.mxu0 0
  %533 = vmatprep.subr.bf16.mxu0 0
  %534 = vmatpush2.bf16.msra.mxu0 0
  %535 = vmatprep.subr.bf16.mxu0 0
  %536 = vmatpush2.bf16.msra.mxu0 0
  %537 = vmatprep.mubr.bf16.mxu0 0
  %538 = vmatmul.mubr.bf16.gmra.mxu0 %v500
  %v539 = vpop.f32.mrf.mxu0
  %v540 = vadd.f32 0.0, %v539
  %v541 = vpop.f32.mrf.mxu0
  %v542 = vpop.f32.mrf.mxu0
  %v543 = vadd.f32 0.0, %v542
  %v544 = vpop.f32.mrf.mxu0
  %545 = vmatprep.mubr.bf16.mxu0 0
  %546 = vmatmul.mubr.bf16.gmra.mxu0 %v503
  %v547 = vpop.f32.mrf.mxu0
  %v548 = vadd.f32 0.0, %v547
  %v549 = vpop.f32.mrf.mxu0
  %v550 = vpop.f32.mrf.mxu0
  %v551 = vadd.f32 0.0, %v550
  %v552 = vpop.f32.mrf.mxu0
  %553 = vdwg.mxu0
  %v554 = vadd.f32 %v493, %v540
  %v555 = vadd.f32 %v494, %v543
  %v556 = vadd.f32 %v495, %v548
  %v557 = vadd.f32 %v496, %v551
  %v558 = vxor.u32 %v554, 2147483648
  %v559 = vxor.u32 %v555, 2147483648
  %v560 = vxor.u32 %v556, 2147483648
  %v561 = vxor.u32 %v557, 2147483648
  %v562 = vmul.f32 %v558, 1.442695
  %v563 = vpow.pop %v562
  %v564 = vmul.f32 %v559, 1.442695
  %v565 = vpow.pop %v564
  %v566 = vmul.f32 %v560, 1.442695
  %v567 = vpow.pop %v566
  %v568 = vmul.f32 %v561, 1.442695
  %v569 = vpow.pop %v568
  %v570 = vadd.f32 %v563, 1.0
  %v571 = vadd.f32 %v565, 1.0
  %v572 = vadd.f32 %v567, 1.0
  %v573 = vadd.f32 %v569, 1.0
  %v574 = vrcp.pop %v570
  %v575 = vmul.f32 1.0, %v574
  %v576 = vrcp.pop %v571
  %v577 = vmul.f32 1.0, %v576
  %v578 = vrcp.pop %v572
  %v579 = vmul.f32 1.0, %v578
  %v580 = vrcp.pop %v573
  %v581 = vmul.f32 1.0, %v580
  %v582 = vtanh.pop %v554
  %v583 = vtanh.pop %v555
  %v584 = vtanh.pop %v556
  %v585 = vtanh.pop %v557
  %v586 = vsel %vm41, %v582, %v575
  %v587 = vsel %vm41, %v583, %v577
  %v588 = vsel %vm41, %v584, %v579
  %v589 = vsel %vm41, %v585, %v581
  %590 = vrot.lane.b32.xlu0 %v586, 96
  %v591 = vpop.permute.xlu0 %590
  %592 = vrot.lane.b32.xlu0 %v587, 96
  %v593 = vpop.permute.xlu0 %592
  %594 = vrot.lane.b32.xlu0 %v588, 96
  %v595 = vpop.permute.xlu0 %594
  %596 = vrot.lane.b32.xlu0 %v589, 96
  %v597 = vpop.permute.xlu0 %596
  %598 = vrot.lane.b32.xlu0 %v586, 64
  %v599 = vpop.permute.xlu0 %598
  %600 = vrot.lane.b32.xlu0 %v587, 64
  %v601 = vpop.permute.xlu0 %600
  %602 = vrot.lane.b32.xlu0 %v588, 64
  %v603 = vpop.permute.xlu0 %602
  %604 = vrot.lane.b32.xlu0 %v589, 64
  %v605 = vpop.permute.xlu0 %604
  %606 = vrot.lane.b32.xlu0 %v586, 32
  %v607 = vpop.permute.xlu0 %606
  %608 = vrot.lane.b32.xlu0 %v587, 32
  %v609 = vpop.permute.xlu0 %608
  %610 = vrot.lane.b32.xlu0 %v588, 32
  %v611 = vpop.permute.xlu0 %610
  %612 = vrot.lane.b32.xlu0 %v589, 32
  %v613 = vpop.permute.xlu0 %612
  %v614 = vmul.f32 %v591, %v476
  %v615 = vmul.f32 %v593, %v477
  %v616 = vmul.f32 %v595, %v478
  %v617 = vmul.f32 %v597, %v479
  %v618 = vmul.f32 %v586, %v599
  %v619 = vmul.f32 %v587, %v601
  %v620 = vmul.f32 %v588, %v603
  %v621 = vmul.f32 %v589, %v605
  %v622 = vadd.f32 %v614, %v618
  %v623 = vadd.f32 %v615, %v619
  %v624 = vadd.f32 %v616, %v620
  %v625 = vadd.f32 %v617, %v621
  %v626 = vtanh.pop %v622
  %v627 = vtanh.pop %v623
  %v628 = vtanh.pop %v624
  %v629 = vtanh.pop %v625
  %v630 = vmul.f32 %v607, %v626
  %v631 = vmul.f32 %v609, %v627
  %v632 = vmul.f32 %v611, %v628
  %v633 = vmul.f32 %v613, %v629
  %s634 = scalar_lea.vmem %s0, 64
  %v635 = vld [vmem:[%s634] sm:$0xf]
  %v636 = vld [vmem:[%s634 + $0x4] sm:$0xf]
  %v637 = vld [vmem:[%s634 + $0x8] sm:$0xf]
  %v638 = vld [vmem:[%s634 + $0xc] sm:$0xf]
  %v639 = vunpack.c.l.bf16 %v635
  %v640 = vunpack.c.l.bf16 %v636
  %v641 = vunpack.c.l.bf16 %v637
  %v642 = vunpack.c.l.bf16 %v638
  %v643 = vpack.c.bf16 %v631, %v630
  %v644 = vpack.c.bf16 %v633, %v632
  %v646 = vsel %vm60, %v643, 0
  %v649 = vsel %vm60, %v644, 0
  %651 = vmatprep.subr.bf16.mxu0 0
  %652 = vmatpush1.bf16.msra.mxu0 0
  %653 = vmatprep.subr.bf16.mxu0 0
  %654 = vmatpush1.bf16.msra.mxu0 0
  %655 = vmatprep.subr.bf16.mxu0 0
  %656 = vmatpush1.bf16.msra.mxu0 0
  %657 = vmatprep.subr.bf16.mxu0 0
  %658 = vmatpush1.bf16.msra.mxu0 0
  %659 = vmatprep.subr.bf16.mxu0 0
  %660 = vmatpush1.bf16.msra.mxu0 0
  %661 = vmatprep.subr.bf16.mxu0 0
  %662 = vmatpush1.bf16.msra.mxu0 0
  %663 = vmatprep.subr.bf16.mxu0 0
  %664 = vmatpush1.bf16.msra.mxu0 %v36
  %665 = vmatprep.subr.bf16.mxu0 0
  %666 = vmatpush1.bf16.msra.mxu0 %v35
  %667 = vmatprep.subr.bf16.mxu0 0
  %668 = vmatpush2.bf16.msra.mxu0 0
  %669 = vmatprep.subr.bf16.mxu0 0
  %670 = vmatpush2.bf16.msra.mxu0 0
  %671 = vmatprep.subr.bf16.mxu0 0
  %672 = vmatpush2.bf16.msra.mxu0 0
  %673 = vmatprep.subr.bf16.mxu0 0
  %674 = vmatpush2.bf16.msra.mxu0 0
  %675 = vmatprep.subr.bf16.mxu0 0
  %676 = vmatpush2.bf16.msra.mxu0 0
  %677 = vmatprep.subr.bf16.mxu0 0
  %678 = vmatpush2.bf16.msra.mxu0 0
  %679 = vmatprep.subr.bf16.mxu0 0
  %680 = vmatpush2.bf16.msra.mxu0 0
  %681 = vmatprep.subr.bf16.mxu0 0
  %682 = vmatpush2.bf16.msra.mxu0 0
  %683 = vmatprep.mubr.bf16.mxu0 0
  %684 = vmatmul.mubr.bf16.gmra.mxu0 %v646
  %v685 = vpop.f32.mrf.mxu0
  %v686 = vadd.f32 0.0, %v685
  %v687 = vpop.f32.mrf.mxu0
  %v688 = vpop.f32.mrf.mxu0
  %v689 = vadd.f32 0.0, %v688
  %v690 = vpop.f32.mrf.mxu0
  %691 = vmatprep.mubr.bf16.mxu0 0
  %692 = vmatmul.mubr.bf16.gmra.mxu0 %v649
  %v693 = vpop.f32.mrf.mxu0
  %v694 = vadd.f32 0.0, %v693
  %v695 = vpop.f32.mrf.mxu0
  %v696 = vpop.f32.mrf.mxu0
  %v697 = vadd.f32 0.0, %v696
  %v698 = vpop.f32.mrf.mxu0
  %699 = vdwg.mxu0
  %v700 = vadd.f32 %v639, %v686
  %v701 = vadd.f32 %v640, %v689
  %v702 = vadd.f32 %v641, %v694
  %v703 = vadd.f32 %v642, %v697
  %v704 = vxor.u32 %v700, 2147483648
  %v705 = vxor.u32 %v701, 2147483648
  %v706 = vxor.u32 %v702, 2147483648
  %v707 = vxor.u32 %v703, 2147483648
  %v708 = vmul.f32 %v704, 1.442695
  %v709 = vpow.pop %v708
  %v710 = vmul.f32 %v705, 1.442695
  %v711 = vpow.pop %v710
  %v712 = vmul.f32 %v706, 1.442695
  %v713 = vpow.pop %v712
  %v714 = vmul.f32 %v707, 1.442695
  %v715 = vpow.pop %v714
  %v716 = vadd.f32 %v709, 1.0
  %v717 = vadd.f32 %v711, 1.0
  %v718 = vadd.f32 %v713, 1.0
  %v719 = vadd.f32 %v715, 1.0
  %v720 = vrcp.pop %v716
  %v721 = vmul.f32 1.0, %v720
  %v722 = vrcp.pop %v717
  %v723 = vmul.f32 1.0, %v722
  %v724 = vrcp.pop %v718
  %v725 = vmul.f32 1.0, %v724
  %v726 = vrcp.pop %v719
  %v727 = vmul.f32 1.0, %v726
  %v728 = vtanh.pop %v700
  %v729 = vtanh.pop %v701
  %v730 = vtanh.pop %v702
  %v731 = vtanh.pop %v703
  %v732 = vsel %vm41, %v728, %v721
  %v733 = vsel %vm41, %v729, %v723
  %v734 = vsel %vm41, %v730, %v725
  %v735 = vsel %vm41, %v731, %v727
  %736 = vrot.lane.b32.xlu0 %v732, 96
  %v737 = vpop.permute.xlu0 %736
  %738 = vrot.lane.b32.xlu0 %v733, 96
  %v739 = vpop.permute.xlu0 %738
  %740 = vrot.lane.b32.xlu0 %v734, 96
  %v741 = vpop.permute.xlu0 %740
  %742 = vrot.lane.b32.xlu0 %v735, 96
  %v743 = vpop.permute.xlu0 %742
  %744 = vrot.lane.b32.xlu0 %v732, 64
  %v745 = vpop.permute.xlu0 %744
  %746 = vrot.lane.b32.xlu0 %v733, 64
  %v747 = vpop.permute.xlu0 %746
  %748 = vrot.lane.b32.xlu0 %v734, 64
  %v749 = vpop.permute.xlu0 %748
  %750 = vrot.lane.b32.xlu0 %v735, 64
  %v751 = vpop.permute.xlu0 %750
  %752 = vrot.lane.b32.xlu0 %v732, 32
  %v753 = vpop.permute.xlu0 %752
  %754 = vrot.lane.b32.xlu0 %v733, 32
  %v755 = vpop.permute.xlu0 %754
  %756 = vrot.lane.b32.xlu0 %v734, 32
  %v757 = vpop.permute.xlu0 %756
  %758 = vrot.lane.b32.xlu0 %v735, 32
  %v759 = vpop.permute.xlu0 %758
  %v760 = vmul.f32 %v737, %v622
  %v761 = vmul.f32 %v739, %v623
  %v762 = vmul.f32 %v741, %v624
  %v763 = vmul.f32 %v743, %v625
  %v764 = vmul.f32 %v732, %v745
  %v765 = vmul.f32 %v733, %v747
  %v766 = vmul.f32 %v734, %v749
  %v767 = vmul.f32 %v735, %v751
  %v768 = vadd.f32 %v760, %v764
  %v769 = vadd.f32 %v761, %v765
  %v770 = vadd.f32 %v762, %v766
  %v771 = vadd.f32 %v763, %v767
  %v772 = vtanh.pop %v768
  %v773 = vtanh.pop %v769
  %v774 = vtanh.pop %v770
  %v775 = vtanh.pop %v771
  %v776 = vmul.f32 %v753, %v772
  %v777 = vmul.f32 %v755, %v773
  %v778 = vmul.f32 %v757, %v774
  %v779 = vmul.f32 %v759, %v775
  %s780 = scalar_lea.vmem %s0, 80
  %v781 = vld [vmem:[%s780] sm:$0xf]
  %v782 = vld [vmem:[%s780 + $0x4] sm:$0xf]
  %v783 = vld [vmem:[%s780 + $0x8] sm:$0xf]
  %v784 = vld [vmem:[%s780 + $0xc] sm:$0xf]
  %v785 = vunpack.c.l.bf16 %v781
  %v786 = vunpack.c.l.bf16 %v782
  %v787 = vunpack.c.l.bf16 %v783
  %v788 = vunpack.c.l.bf16 %v784
  %v789 = vpack.c.bf16 %v777, %v776
  %v790 = vpack.c.bf16 %v779, %v778
  %v792 = vsel %vm60, %v789, 0
  %v795 = vsel %vm60, %v790, 0
  %797 = vmatprep.subr.bf16.mxu0 0
  %798 = vmatpush1.bf16.msra.mxu0 0
  %799 = vmatprep.subr.bf16.mxu0 0
  %800 = vmatpush1.bf16.msra.mxu0 0
  %801 = vmatprep.subr.bf16.mxu0 0
  %802 = vmatpush1.bf16.msra.mxu0 0
  %803 = vmatprep.subr.bf16.mxu0 0
  %804 = vmatpush1.bf16.msra.mxu0 0
  %805 = vmatprep.subr.bf16.mxu0 0
  %806 = vmatpush1.bf16.msra.mxu0 0
  %807 = vmatprep.subr.bf16.mxu0 0
  %808 = vmatpush1.bf16.msra.mxu0 0
  %809 = vmatprep.subr.bf16.mxu0 0
  %810 = vmatpush1.bf16.msra.mxu0 %v36
  %811 = vmatprep.subr.bf16.mxu0 0
  %812 = vmatpush1.bf16.msra.mxu0 %v35
  %813 = vmatprep.subr.bf16.mxu0 0
  %814 = vmatpush2.bf16.msra.mxu0 0
  %815 = vmatprep.subr.bf16.mxu0 0
  %816 = vmatpush2.bf16.msra.mxu0 0
  %817 = vmatprep.subr.bf16.mxu0 0
  %818 = vmatpush2.bf16.msra.mxu0 0
  %819 = vmatprep.subr.bf16.mxu0 0
  %820 = vmatpush2.bf16.msra.mxu0 0
  %821 = vmatprep.subr.bf16.mxu0 0
  %822 = vmatpush2.bf16.msra.mxu0 0
  %823 = vmatprep.subr.bf16.mxu0 0
  %824 = vmatpush2.bf16.msra.mxu0 0
  %825 = vmatprep.subr.bf16.mxu0 0
  %826 = vmatpush2.bf16.msra.mxu0 0
  %827 = vmatprep.subr.bf16.mxu0 0
  %828 = vmatpush2.bf16.msra.mxu0 0
  %829 = vmatprep.mubr.bf16.mxu0 0
  %830 = vmatmul.mubr.bf16.gmra.mxu0 %v792
  %v831 = vpop.f32.mrf.mxu0
  %v832 = vadd.f32 0.0, %v831
  %v833 = vpop.f32.mrf.mxu0
  %v834 = vpop.f32.mrf.mxu0
  %v835 = vadd.f32 0.0, %v834
  %v836 = vpop.f32.mrf.mxu0
  %837 = vmatprep.mubr.bf16.mxu0 0
  %838 = vmatmul.mubr.bf16.gmra.mxu0 %v795
  %v839 = vpop.f32.mrf.mxu0
  %v840 = vadd.f32 0.0, %v839
  %v841 = vpop.f32.mrf.mxu0
  %v842 = vpop.f32.mrf.mxu0
  %v843 = vadd.f32 0.0, %v842
  %v844 = vpop.f32.mrf.mxu0
  %845 = vdwg.mxu0
  %v846 = vadd.f32 %v785, %v832
  %v847 = vadd.f32 %v786, %v835
  %v848 = vadd.f32 %v787, %v840
  %v849 = vadd.f32 %v788, %v843
  %v850 = vxor.u32 %v846, 2147483648
  %v851 = vxor.u32 %v847, 2147483648
  %v852 = vxor.u32 %v848, 2147483648
  %v853 = vxor.u32 %v849, 2147483648
  %v854 = vmul.f32 %v850, 1.442695
  %v855 = vpow.pop %v854
  %v856 = vmul.f32 %v851, 1.442695
  %v857 = vpow.pop %v856
  %v858 = vmul.f32 %v852, 1.442695
  %v859 = vpow.pop %v858
  %v860 = vmul.f32 %v853, 1.442695
  %v861 = vpow.pop %v860
  %v862 = vadd.f32 %v855, 1.0
  %v863 = vadd.f32 %v857, 1.0
  %v864 = vadd.f32 %v859, 1.0
  %v865 = vadd.f32 %v861, 1.0
  %v866 = vrcp.pop %v862
  %v867 = vmul.f32 1.0, %v866
  %v868 = vrcp.pop %v863
  %v869 = vmul.f32 1.0, %v868
  %v870 = vrcp.pop %v864
  %v871 = vmul.f32 1.0, %v870
  %v872 = vrcp.pop %v865
  %v873 = vmul.f32 1.0, %v872
  %v874 = vtanh.pop %v846
  %v875 = vtanh.pop %v847
  %v876 = vtanh.pop %v848
  %v877 = vtanh.pop %v849
  %v878 = vsel %vm41, %v874, %v867
  %v879 = vsel %vm41, %v875, %v869
  %v880 = vsel %vm41, %v876, %v871
  %v881 = vsel %vm41, %v877, %v873
  %882 = vrot.lane.b32.xlu0 %v878, 96
  %v883 = vpop.permute.xlu0 %882
  %884 = vrot.lane.b32.xlu0 %v879, 96
  %v885 = vpop.permute.xlu0 %884
  %886 = vrot.lane.b32.xlu0 %v880, 96
  %v887 = vpop.permute.xlu0 %886
  %888 = vrot.lane.b32.xlu0 %v881, 96
  %v889 = vpop.permute.xlu0 %888
  %890 = vrot.lane.b32.xlu0 %v878, 64
  %v891 = vpop.permute.xlu0 %890
  %892 = vrot.lane.b32.xlu0 %v879, 64
  %v893 = vpop.permute.xlu0 %892
  %894 = vrot.lane.b32.xlu0 %v880, 64
  %v895 = vpop.permute.xlu0 %894
  %896 = vrot.lane.b32.xlu0 %v881, 64
  %v897 = vpop.permute.xlu0 %896
  %898 = vrot.lane.b32.xlu0 %v878, 32
  %v899 = vpop.permute.xlu0 %898
  %900 = vrot.lane.b32.xlu0 %v879, 32
  %v901 = vpop.permute.xlu0 %900
  %902 = vrot.lane.b32.xlu0 %v880, 32
  %v903 = vpop.permute.xlu0 %902
  %904 = vrot.lane.b32.xlu0 %v881, 32
  %v905 = vpop.permute.xlu0 %904
  %v906 = vmul.f32 %v883, %v768
  %v907 = vmul.f32 %v885, %v769
  %v908 = vmul.f32 %v887, %v770
  %v909 = vmul.f32 %v889, %v771
  %v910 = vmul.f32 %v878, %v891
  %v911 = vmul.f32 %v879, %v893
  %v912 = vmul.f32 %v880, %v895
  %v913 = vmul.f32 %v881, %v897
  %v914 = vadd.f32 %v906, %v910
  %v915 = vadd.f32 %v907, %v911
  %v916 = vadd.f32 %v908, %v912
  %v917 = vadd.f32 %v909, %v913
  %v918 = vtanh.pop %v914
  %v919 = vtanh.pop %v915
  %v920 = vtanh.pop %v916
  %v921 = vtanh.pop %v917
  %v922 = vmul.f32 %v899, %v918
  %v923 = vmul.f32 %v901, %v919
  %v924 = vmul.f32 %v903, %v920
  %v925 = vmul.f32 %v905, %v921
  %s926 = scalar_lea.vmem %s0, 96
  %v927 = vld [vmem:[%s926] sm:$0xf]
  %v928 = vld [vmem:[%s926 + $0x4] sm:$0xf]
  %v929 = vld [vmem:[%s926 + $0x8] sm:$0xf]
  %v930 = vld [vmem:[%s926 + $0xc] sm:$0xf]
  %v931 = vunpack.c.l.bf16 %v927
  %v932 = vunpack.c.l.bf16 %v928
  %v933 = vunpack.c.l.bf16 %v929
  %v934 = vunpack.c.l.bf16 %v930
  %v935 = vpack.c.bf16 %v923, %v922
  %v936 = vpack.c.bf16 %v925, %v924
  %v938 = vsel %vm60, %v935, 0
  %v941 = vsel %vm60, %v936, 0
  %943 = vmatprep.subr.bf16.mxu0 0
  %944 = vmatpush1.bf16.msra.mxu0 0
  %945 = vmatprep.subr.bf16.mxu0 0
  %946 = vmatpush1.bf16.msra.mxu0 0
  %947 = vmatprep.subr.bf16.mxu0 0
  %948 = vmatpush1.bf16.msra.mxu0 0
  %949 = vmatprep.subr.bf16.mxu0 0
  %950 = vmatpush1.bf16.msra.mxu0 0
  %951 = vmatprep.subr.bf16.mxu0 0
  %952 = vmatpush1.bf16.msra.mxu0 0
  %953 = vmatprep.subr.bf16.mxu0 0
  %954 = vmatpush1.bf16.msra.mxu0 0
  %955 = vmatprep.subr.bf16.mxu0 0
  %956 = vmatpush1.bf16.msra.mxu0 %v36
  %957 = vmatprep.subr.bf16.mxu0 0
  %958 = vmatpush1.bf16.msra.mxu0 %v35
  %959 = vmatprep.subr.bf16.mxu0 0
  %960 = vmatpush2.bf16.msra.mxu0 0
  %961 = vmatprep.subr.bf16.mxu0 0
  %962 = vmatpush2.bf16.msra.mxu0 0
  %963 = vmatprep.subr.bf16.mxu0 0
  %964 = vmatpush2.bf16.msra.mxu0 0
  %965 = vmatprep.subr.bf16.mxu0 0
  %966 = vmatpush2.bf16.msra.mxu0 0
  %967 = vmatprep.subr.bf16.mxu0 0
  %968 = vmatpush2.bf16.msra.mxu0 0
  %969 = vmatprep.subr.bf16.mxu0 0
  %970 = vmatpush2.bf16.msra.mxu0 0
  %971 = vmatprep.subr.bf16.mxu0 0
  %972 = vmatpush2.bf16.msra.mxu0 0
  %973 = vmatprep.subr.bf16.mxu0 0
  %974 = vmatpush2.bf16.msra.mxu0 0
  %975 = vmatprep.mubr.bf16.mxu0 0
  %976 = vmatmul.mubr.bf16.gmra.mxu0 %v938
  %v977 = vpop.f32.mrf.mxu0
  %v978 = vadd.f32 0.0, %v977
  %v979 = vpop.f32.mrf.mxu0
  %v980 = vpop.f32.mrf.mxu0
  %v981 = vadd.f32 0.0, %v980
  %v982 = vpop.f32.mrf.mxu0
  %983 = vmatprep.mubr.bf16.mxu0 0
  %984 = vmatmul.mubr.bf16.gmra.mxu0 %v941
  %v985 = vpop.f32.mrf.mxu0
  %v986 = vadd.f32 0.0, %v985
  %v987 = vpop.f32.mrf.mxu0
  %v988 = vpop.f32.mrf.mxu0
  %v989 = vadd.f32 0.0, %v988
  %v990 = vpop.f32.mrf.mxu0
  %991 = vdwg.mxu0
  %v992 = vadd.f32 %v931, %v978
  %v993 = vadd.f32 %v932, %v981
  %v994 = vadd.f32 %v933, %v986
  %v995 = vadd.f32 %v934, %v989
  %v996 = vxor.u32 %v992, 2147483648
  %v997 = vxor.u32 %v993, 2147483648
  %v998 = vxor.u32 %v994, 2147483648
  %v999 = vxor.u32 %v995, 2147483648
  %v1000 = vmul.f32 %v996, 1.442695
  %v1001 = vpow.pop %v1000
  %v1002 = vmul.f32 %v997, 1.442695
  %v1003 = vpow.pop %v1002
  %v1004 = vmul.f32 %v998, 1.442695
  %v1005 = vpow.pop %v1004
  %v1006 = vmul.f32 %v999, 1.442695
  %v1007 = vpow.pop %v1006
  %v1008 = vadd.f32 %v1001, 1.0
  %v1009 = vadd.f32 %v1003, 1.0
  %v1010 = vadd.f32 %v1005, 1.0
  %v1011 = vadd.f32 %v1007, 1.0
  %v1012 = vrcp.pop %v1008
  %v1013 = vmul.f32 1.0, %v1012
  %v1014 = vrcp.pop %v1009
  %v1015 = vmul.f32 1.0, %v1014
  %v1016 = vrcp.pop %v1010
  %v1017 = vmul.f32 1.0, %v1016
  %v1018 = vrcp.pop %v1011
  %v1019 = vmul.f32 1.0, %v1018
  %v1020 = vtanh.pop %v992
  %v1021 = vtanh.pop %v993
  %v1022 = vtanh.pop %v994
  %v1023 = vtanh.pop %v995
  %v1024 = vsel %vm41, %v1020, %v1013
  %v1025 = vsel %vm41, %v1021, %v1015
  %v1026 = vsel %vm41, %v1022, %v1017
  %v1027 = vsel %vm41, %v1023, %v1019
  %1028 = vrot.lane.b32.xlu0 %v1024, 96
  %v1029 = vpop.permute.xlu0 %1028
  %1030 = vrot.lane.b32.xlu0 %v1025, 96
  %v1031 = vpop.permute.xlu0 %1030
  %1032 = vrot.lane.b32.xlu0 %v1026, 96
  %v1033 = vpop.permute.xlu0 %1032
  %1034 = vrot.lane.b32.xlu0 %v1027, 96
  %v1035 = vpop.permute.xlu0 %1034
  %1036 = vrot.lane.b32.xlu0 %v1024, 64
  %v1037 = vpop.permute.xlu0 %1036
  %1038 = vrot.lane.b32.xlu0 %v1025, 64
  %v1039 = vpop.permute.xlu0 %1038
  %1040 = vrot.lane.b32.xlu0 %v1026, 64
  %v1041 = vpop.permute.xlu0 %1040
  %1042 = vrot.lane.b32.xlu0 %v1027, 64
  %v1043 = vpop.permute.xlu0 %1042
  %1044 = vrot.lane.b32.xlu0 %v1024, 32
  %v1045 = vpop.permute.xlu0 %1044
  %1046 = vrot.lane.b32.xlu0 %v1025, 32
  %v1047 = vpop.permute.xlu0 %1046
  %1048 = vrot.lane.b32.xlu0 %v1026, 32
  %v1049 = vpop.permute.xlu0 %1048
  %1050 = vrot.lane.b32.xlu0 %v1027, 32
  %v1051 = vpop.permute.xlu0 %1050
  %v1052 = vmul.f32 %v1029, %v914
  %v1053 = vmul.f32 %v1031, %v915
  %v1054 = vmul.f32 %v1033, %v916
  %v1055 = vmul.f32 %v1035, %v917
  %v1056 = vmul.f32 %v1024, %v1037
  %v1057 = vmul.f32 %v1025, %v1039
  %v1058 = vmul.f32 %v1026, %v1041
  %v1059 = vmul.f32 %v1027, %v1043
  %v1060 = vadd.f32 %v1052, %v1056
  %v1061 = vadd.f32 %v1053, %v1057
  %v1062 = vadd.f32 %v1054, %v1058
  %v1063 = vadd.f32 %v1055, %v1059
  %v1064 = vtanh.pop %v1060
  %v1065 = vtanh.pop %v1061
  %v1066 = vtanh.pop %v1062
  %v1067 = vtanh.pop %v1063
  %v1068 = vmul.f32 %v1045, %v1064
  %v1069 = vmul.f32 %v1047, %v1065
  %v1070 = vmul.f32 %v1049, %v1066
  %v1071 = vmul.f32 %v1051, %v1067
  %s1072 = scalar_lea.vmem %s0, 112
  %v1073 = vld [vmem:[%s1072] sm:$0xf]
  %v1074 = vld [vmem:[%s1072 + $0x4] sm:$0xf]
  %v1075 = vld [vmem:[%s1072 + $0x8] sm:$0xf]
  %v1076 = vld [vmem:[%s1072 + $0xc] sm:$0xf]
  %v1077 = vunpack.c.l.bf16 %v1073
  %v1078 = vunpack.c.l.bf16 %v1074
  %v1079 = vunpack.c.l.bf16 %v1075
  %v1080 = vunpack.c.l.bf16 %v1076
  %v1081 = vpack.c.bf16 %v1069, %v1068
  %v1082 = vpack.c.bf16 %v1071, %v1070
  %v1084 = vsel %vm60, %v1081, 0
  %v1087 = vsel %vm60, %v1082, 0
  %1089 = vmatprep.subr.bf16.mxu0 0
  %1090 = vmatpush1.bf16.msra.mxu0 0
  %1091 = vmatprep.subr.bf16.mxu0 0
  %1092 = vmatpush1.bf16.msra.mxu0 0
  %1093 = vmatprep.subr.bf16.mxu0 0
  %1094 = vmatpush1.bf16.msra.mxu0 0
  %1095 = vmatprep.subr.bf16.mxu0 0
  %1096 = vmatpush1.bf16.msra.mxu0 0
  %1097 = vmatprep.subr.bf16.mxu0 0
  %1098 = vmatpush1.bf16.msra.mxu0 0
  %1099 = vmatprep.subr.bf16.mxu0 0
  %1100 = vmatpush1.bf16.msra.mxu0 0
  %1101 = vmatprep.subr.bf16.mxu0 0
  %1102 = vmatpush1.bf16.msra.mxu0 %v36
  %1103 = vmatprep.subr.bf16.mxu0 0
  %1104 = vmatpush1.bf16.msra.mxu0 %v35
  %1105 = vmatprep.subr.bf16.mxu0 0
  %1106 = vmatpush2.bf16.msra.mxu0 0
  %1107 = vmatprep.subr.bf16.mxu0 0
  %1108 = vmatpush2.bf16.msra.mxu0 0
  %1109 = vmatprep.subr.bf16.mxu0 0
  %1110 = vmatpush2.bf16.msra.mxu0 0
  %1111 = vmatprep.subr.bf16.mxu0 0
  %1112 = vmatpush2.bf16.msra.mxu0 0
  %1113 = vmatprep.subr.bf16.mxu0 0
  %1114 = vmatpush2.bf16.msra.mxu0 0
  %1115 = vmatprep.subr.bf16.mxu0 0
  %1116 = vmatpush2.bf16.msra.mxu0 0
  %1117 = vmatprep.subr.bf16.mxu0 0
  %1118 = vmatpush2.bf16.msra.mxu0 0
  %1119 = vmatprep.subr.bf16.mxu0 0
  %1120 = vmatpush2.bf16.msra.mxu0 0
  %1121 = vmatprep.mubr.bf16.mxu0 0
  %1122 = vmatmul.mubr.bf16.gmra.mxu0 %v1084
  %v1123 = vpop.f32.mrf.mxu0
  %v1124 = vadd.f32 0.0, %v1123
  %v1125 = vpop.f32.mrf.mxu0
  %v1126 = vpop.f32.mrf.mxu0
  %v1127 = vadd.f32 0.0, %v1126
  %v1128 = vpop.f32.mrf.mxu0
  %1129 = vmatprep.mubr.bf16.mxu0 0
  %1130 = vmatmul.mubr.bf16.gmra.mxu0 %v1087
  %v1131 = vpop.f32.mrf.mxu0
  %v1132 = vadd.f32 0.0, %v1131
  %v1133 = vpop.f32.mrf.mxu0
  %v1134 = vpop.f32.mrf.mxu0
  %v1135 = vadd.f32 0.0, %v1134
  %v1136 = vpop.f32.mrf.mxu0
  %1137 = vdwg.mxu0
  %v1138 = vadd.f32 %v1077, %v1124
  %v1139 = vadd.f32 %v1078, %v1127
  %v1140 = vadd.f32 %v1079, %v1132
  %v1141 = vadd.f32 %v1080, %v1135
  %v1142 = vxor.u32 %v1138, 2147483648
  %v1143 = vxor.u32 %v1139, 2147483648
  %v1144 = vxor.u32 %v1140, 2147483648
  %v1145 = vxor.u32 %v1141, 2147483648
  %v1146 = vmul.f32 %v1142, 1.442695
  %v1147 = vpow.pop %v1146
  %v1148 = vmul.f32 %v1143, 1.442695
  %v1149 = vpow.pop %v1148
  %v1150 = vmul.f32 %v1144, 1.442695
  %v1151 = vpow.pop %v1150
  %v1152 = vmul.f32 %v1145, 1.442695
  %v1153 = vpow.pop %v1152
  %v1154 = vadd.f32 %v1147, 1.0
  %v1155 = vadd.f32 %v1149, 1.0
  %v1156 = vadd.f32 %v1151, 1.0
  %v1157 = vadd.f32 %v1153, 1.0
  %v1158 = vrcp.pop %v1154
  %v1159 = vmul.f32 1.0, %v1158
  %v1160 = vrcp.pop %v1155
  %v1161 = vmul.f32 1.0, %v1160
  %v1162 = vrcp.pop %v1156
  %v1163 = vmul.f32 1.0, %v1162
  %v1164 = vrcp.pop %v1157
  %v1165 = vmul.f32 1.0, %v1164
  %v1166 = vtanh.pop %v1138
  %v1167 = vtanh.pop %v1139
  %v1168 = vtanh.pop %v1140
  %v1169 = vtanh.pop %v1141
  %v1170 = vsel %vm41, %v1166, %v1159
  %v1171 = vsel %vm41, %v1167, %v1161
  %v1172 = vsel %vm41, %v1168, %v1163
  %v1173 = vsel %vm41, %v1169, %v1165
  %1174 = vrot.lane.b32.xlu0 %v1170, 96
  %v1175 = vpop.permute.xlu0 %1174
  %1176 = vrot.lane.b32.xlu0 %v1171, 96
  %v1177 = vpop.permute.xlu0 %1176
  %1178 = vrot.lane.b32.xlu0 %v1172, 96
  %v1179 = vpop.permute.xlu0 %1178
  %1180 = vrot.lane.b32.xlu0 %v1173, 96
  %v1181 = vpop.permute.xlu0 %1180
  %1182 = vrot.lane.b32.xlu0 %v1170, 64
  %v1183 = vpop.permute.xlu0 %1182
  %1184 = vrot.lane.b32.xlu0 %v1171, 64
  %v1185 = vpop.permute.xlu0 %1184
  %1186 = vrot.lane.b32.xlu0 %v1172, 64
  %v1187 = vpop.permute.xlu0 %1186
  %1188 = vrot.lane.b32.xlu0 %v1173, 64
  %v1189 = vpop.permute.xlu0 %1188
  %1190 = vrot.lane.b32.xlu0 %v1170, 32
  %v1191 = vpop.permute.xlu0 %1190
  %1192 = vrot.lane.b32.xlu0 %v1171, 32
  %v1193 = vpop.permute.xlu0 %1192
  %1194 = vrot.lane.b32.xlu0 %v1172, 32
  %v1195 = vpop.permute.xlu0 %1194
  %1196 = vrot.lane.b32.xlu0 %v1173, 32
  %v1197 = vpop.permute.xlu0 %1196
  %v1198 = vmul.f32 %v1175, %v1060
  %v1199 = vmul.f32 %v1177, %v1061
  %v1200 = vmul.f32 %v1179, %v1062
  %v1201 = vmul.f32 %v1181, %v1063
  %v1202 = vmul.f32 %v1170, %v1183
  %v1203 = vmul.f32 %v1171, %v1185
  %v1204 = vmul.f32 %v1172, %v1187
  %v1205 = vmul.f32 %v1173, %v1189
  %v1206 = vadd.f32 %v1198, %v1202
  %v1207 = vadd.f32 %v1199, %v1203
  %v1208 = vadd.f32 %v1200, %v1204
  %v1209 = vadd.f32 %v1201, %v1205
  %v1210 = vtanh.pop %v1206
  %v1211 = vtanh.pop %v1207
  %v1212 = vtanh.pop %v1208
  %v1213 = vtanh.pop %v1209
  %v1214 = vmul.f32 %v1191, %v1210
  %v1215 = vmul.f32 %v1193, %v1211
  %v1216 = vmul.f32 %v1195, %v1212
  %v1217 = vmul.f32 %v1197, %v1213
  %1218 = vst.msk [vmem:[#allocation2] sm:$0xff] %vm60, %v1214
  %1219 = vst.msk [vmem:[#allocation2 + $0x8] sm:$0xff] %vm60, %v1215
  %1220 = vst.msk [vmem:[#allocation2 + $0x10] sm:$0xff] %vm60, %v1216
  %1221 = vst.msk [vmem:[#allocation2 + $0x18] sm:$0xff] %vm60, %v1217
  %1222 = vst [vmem:[#allocation3] sm:$0xff] %v1206
  %1223 = vst [vmem:[#allocation3 + $0x8] sm:$0xff] %v1207
  %1224 = vst [vmem:[#allocation3 + $0x10] sm:$0xff] %v1208
  %1225 = vst [vmem:[#allocation3 + $0x18] sm:$0xff] %v1209
  // Predicated region
  $region22: #{comment_classifier_forward.1} parent=0 // pred_check
    %p1226 = pneg %p18
  $region23: #{comment_classifier_forward.1} parent=0 // pred_check_branch
    %1228 = sbr.rel (%p1226) target = $region25
  $region24: #{comment_classifier_forward.1} parent=0 // pred_region
    %v1229 = vld [vmem:[%s2] sm:$0xff]
    %v1230 = vld [vmem:[%s2 + $0x8] sm:$0xff]
    %v1231 = vld [vmem:[%s2 + $0x10] sm:$0xff]
    %v1232 = vld [vmem:[%s2 + $0x18] sm:$0xff]
    %v1233 = vld [vmem:[%s3] sm:$0x1]
    %v1235 = vlaneseq
    %v1236 = vshrl.u32 %v1235, 7
    %v1237 = vsub.s32 0, %v1236
    %v1238 = vrot.slane %v1233, %v1237
    %v1241 = vsel %vm60, %v1214, 0
    %v1244 = vsel %vm60, %v1215, 0
    %v1247 = vsel %vm60, %v1216, 0
    %v1250 = vsel %vm60, %v1217, 0
    %1252 = vmatprep.subr.mxu0 0.0
    %1253 = vmatpush1.msra.mxu0 0.0
    %1254 = vmatprep.subr.mxu0 0.0
    %1255 = vmatpush1.msra.mxu0 0.0
    %1256 = vmatprep.subr.mxu0 0.0
    %1257 = vmatpush1.msra.mxu0 0.0
    %1258 = vmatprep.subr.mxu0 0.0
    %1259 = vmatpush1.msra.mxu0 0.0
    %1260 = vmatprep.subr.mxu0 0.0
    %1261 = vmatpush1.msra.mxu0 0.0
    %1262 = vmatprep.subr.mxu0 0.0
    %1263 = vmatpush1.msra.mxu0 0.0
    %1264 = vmatprep.subr.mxu0 0.0
    %1265 = vmatpush1.msra.mxu0 0.0
    %1266 = vmatprep.subr.mxu0 0.0
    %1267 = vmatpush1.msra.mxu0 0.0
    %1268 = vmatprep.subr.mxu0 0.0
    %1269 = vmatpush1.msra.mxu0 0.0
    %1270 = vmatprep.subr.mxu0 0.0
    %1271 = vmatpush1.msra.mxu0 0.0
    %1272 = vmatprep.subr.mxu0 0.0
    %1273 = vmatpush1.msra.mxu0 0.0
    %1274 = vmatprep.subr.mxu0 0.0
    %1275 = vmatpush1.msra.mxu0 0.0
    %1276 = vmatprep.subr.mxu0 0.0
    %1277 = vmatpush1.msra.mxu0 %v1232
    %1278 = vmatprep.subr.mxu0 0.0
    %1279 = vmatpush1.msra.mxu0 %v1231
    %1280 = vmatprep.subr.mxu0 0.0
    %1281 = vmatpush1.msra.mxu0 %v1230
    %1282 = vmatprep.subr.mxu0 0.0
    %1283 = vmatpush1.msra.mxu0 %v1229
    %1284 = vmatprep.subr.mxu0 0.0
    %1285 = vmatpush2.msra.mxu0 0.0
    %1286 = vmatprep.subr.mxu0 0.0
    %1287 = vmatpush2.msra.mxu0 0.0
    %1288 = vmatprep.subr.mxu0 0.0
    %1289 = vmatpush2.msra.mxu0 0.0
    %1290 = vmatprep.subr.mxu0 0.0
    %1291 = vmatpush2.msra.mxu0 0.0
    %1292 = vmatprep.subr.mxu0 0.0
    %1293 = vmatpush2.msra.mxu0 0.0
    %1294 = vmatprep.subr.mxu0 0.0
    %1295 = vmatpush2.msra.mxu0 0.0
    %1296 = vmatprep.subr.mxu0 0.0
    %1297 = vmatpush2.msra.mxu0 0.0
    %1298 = vmatprep.subr.mxu0 0.0
    %1299 = vmatpush2.msra.mxu0 0.0
    %1300 = vmatprep.subr.mxu0 0.0
    %1301 = vmatpush2.msra.mxu0 0.0
    %1302 = vmatprep.subr.mxu0 0.0
    %1303 = vmatpush2.msra.mxu0 0.0
    %1304 = vmatprep.subr.mxu0 0.0
    %1305 = vmatpush2.msra.mxu0 0.0
    %1306 = vmatprep.subr.mxu0 0.0
    %1307 = vmatpush2.msra.mxu0 0.0
    %1308 = vmatprep.subr.mxu0 0.0
    %1309 = vmatpush2.msra.mxu0 0.0
    %1310 = vmatprep.subr.mxu0 0.0
    %1311 = vmatpush2.msra.mxu0 0.0
    %1312 = vmatprep.subr.mxu0 0.0
    %1313 = vmatpush2.msra.mxu0 0.0
    %1314 = vmatprep.subr.mxu0 0.0
    %1315 = vmatpush2.msra.mxu0 0.0
    %1316 = vmatprep.mubr.f32.mxu0 0.0
    %1317 = vmatmul.mubr.f32.gmra.mxu0 %v1241
    %v1318 = vpop.f32.mrf.mxu0
    %v1319 = vadd.f32 %v1238, %v1318
    %v1320 = vpop.f32.mrf.mxu0
    %1321 = vmatprep.mubr.f32.mxu0 0.0
    %1322 = vmatmul.mubr.f32.gmra.mxu0 %v1244
    %v1323 = vpop.f32.mrf.mxu0
    %v1324 = vadd.f32 %v1238, %v1323
    %v1325 = vpop.f32.mrf.mxu0
    %1326 = vmatprep.mubr.f32.mxu0 0.0
    %1327 = vmatmul.mubr.f32.gmra.mxu0 %v1247
    %v1328 = vpop.f32.mrf.mxu0
    %v1329 = vadd.f32 %v1238, %v1328
    %v1330 = vpop.f32.mrf.mxu0
    %1331 = vmatprep.mubr.f32.mxu0 0.0
    %1332 = vmatmul.mubr.f32.gmra.mxu0 %v1250
    %v1333 = vpop.f32.mrf.mxu0
    %v1334 = vadd.f32 %v1238, %v1333
    %v1335 = vpop.f32.mrf.mxu0
    %1336 = vdwg.mxu0
    %1337 = vst [vmem:[%s4] sm:$0xff] %v1319
    %1338 = vst [vmem:[%s4 + $0x8] sm:$0xff] %v1324
    %1339 = vst [vmem:[%s4 + $0x10] sm:$0xff] %v1329
    %1340 = vst [vmem:[%s4 + $0x18] sm:$0xff] %v1334
  $region25: #{comment_classifier_forward.1} parent=0 // pred_fallthru
    _
  // Predicated region
  $region26: #{comment_classifier_forward.1} parent=0 // pred_check
    _
  $region27: #{comment_classifier_forward.1} parent=0 // pred_check_branch
    %1342 = sbr.rel (0) target = $region29
  $region28: #{comment_classifier_forward.1} parent=0 // pred_region
    _
  $region29: #{comment_classifier_forward.1} parent=0 // pred_fallthru
    _
  // Predicated region
  $region30: #{comment_classifier_forward.1} parent=0 // pred_check
    _
  $region31: #{comment_classifier_forward.1} parent=0 // pred_check_branch
    %1344 = sbr.rel (0) target = $region33
  $region32: #{comment_classifier_forward.1} parent=0 // pred_region
    _
  $region33: #{comment_classifier_forward.1} parent=0 // pred_fallthru
    _

</llo_original>
